<compile_context>
chip_gen: v7x
topology: tpu7x:2x2x1
jax: 0.10.0
libtpu: 0.0.40
codegen_flags: <defaults>
</compile_context>

<pallas_src>
import math
import functools

import jax
import jax.numpy as jnp
from jax.experimental import pallas as pl
from jax.experimental.pallas import tpu as pltpu

# ---- model hyperparameters (small config consistent with the module's forward) ----
INPUT_DIM = 32      # num_elements
HIDDEN_DIM = 32
OUTPUT_DIM = 64
NUM_HEADS = 4
HEAD_DIM = HIDDEN_DIM // NUM_HEADS
LN_EPS = 1e-5


def _layernorm(x, gamma, beta):
    mu = jnp.mean(x, axis=-1, keepdims=True)
    var = jnp.mean((x - mu) ** 2, axis=-1, keepdims=True)
    return (x - mu) * jax.lax.rsqrt(var + LN_EPS) * gamma + beta


def _round_up(n, m):
    return ((n + m - 1) // m) * m


def _pick_group(bt, seq):
    """Largest power-of-two group size dividing bt with <= ~256 packed attention lanes."""
    target = max(1, 256 // (NUM_HEADS * seq))
    g, cand = 1, 1
    while cand * 2 <= min(target, bt):
        cand *= 2
        if bt % cand == 0:
            g = cand
    return g


def composition_encoder_kernel(
    x_ref,                                   # (BT, S, INPUT_DIM)   streamed activations
    w1_ref, b1_ref, g1_ref, be1_ref,         # input projection + LN
    wqkv_ref, bqkv_ref,                      # fused Q/K/V projection (Q columns pre-scaled)
    wo_ref, bo_ref,                          # attention out-proj
    wp_ref, bp_ref,                          # pooling attention Linear(H, 1)
    w2_ref, b2_ref, g2_ref, be2_ref,         # output projection + LN
    kvmask_ref,                              # (NH*S, H)        head mask for K/V tiles
    negmask_ref,                             # (G*S, G*NH*S)    additive -1e30 group mask (f32)
    bones_ref,                               # (G*NH*S, G*NH*S) block-diag ones (per-head sums)
    out_ref,                                 # (BT, OUTPUT_DIM)
    *, bt, seq, group, approx_recip,
):
    S = seq
    G = group
    NS = NUM_HEADS * S
    nG = bt // G
    mxu = w1_ref.dtype                       # MXU operand dtype (weights pre-cast on host)

    def recip(x):
        if approx_recip:
            return pl.reciprocal(x, approx=True)
        return 1.0 / x

    x2 = x_ref[...].reshape(bt * S, INPUT_DIM)

    # --- input_projection: Linear -> LayerNorm -> ReLU (Dropout = identity) ---
    h = jnp.dot(x2, w1_ref[...], preferred_element_type=jnp.float32) + b1_ref[...]
    h = _layernorm(h, g1_ref[...], be1_ref[...])
    h = jnp.maximum(h, 0.0)                                         # [BT*S, H] f32

    # --- element_attention: nn.MultiheadAttention self-attention (batch_first, eval) ---
    qkv = jnp.dot(h.astype(mxu), wqkv_ref[...],
                  preferred_element_type=jnp.float32) + bqkv_ref[...]   # [BT*S, 3H]
    q = qkv[:, :HIDDEN_DIM].astype(mxu)
    k = qkv[:, HIDDEN_DIM:2 * HIDDEN_DIM].astype(mxu).reshape(bt, S, HIDDEN_DIM)
    v = qkv[:, 2 * HIDDEN_DIM:].astype(mxu).reshape(bt, S, HIDDEN_DIM)

    # Head-tiled, head-masked K/V (mask is a resident host constant, applied in MXU dtype).
    k_exp = jnp.concatenate([k] * NUM_HEADS, axis=1) * kvmask_ref[...]   # [BT, NS, H]
    v_exp = jnp.concatenate([v] * NUM_HEADS, axis=1) * kvmask_ref[...]   # [BT, NS, H]

    # Pack G examples per MXU call: one [G*S, H] x [H, G*NS] matmul serves G examples;
    # cross-example lanes are masked to -1e30 below so their softmax weights are exactly 0.
    Qg = q.reshape(nG, G * S, HIDDEN_DIM)
    Kg = k_exp.reshape(nG, G * NS, HIDDEN_DIM)
    Vg = v_exp.reshape(nG, G * NS, HIDDEN_DIM)

    scores = jnp.einsum("gne,gme->gnm", Qg, Kg,
                        preferred_element_type=jnp.float32)          # [nG, G*S, G*NS]
    scores = scores + negmask_ref[...]                               # kill cross-example lanes

    m = jnp.max(scores, axis=-1, keepdims=True)                      # per-example max
    p = jnp.exp(scores - m)                                          # cross-example lanes -> 0

    # Per-head softmax denominators via a resident block-diagonal ones matmul.
    p2 = p.reshape(nG * G * S, G * NS)
    denom = jnp.dot(p2.astype(mxu), bones_ref[...],
                    preferred_element_type=jnp.float32) + 1e-30      # floor avoids 0*inf
    pn = (p2 * recip(denom)).reshape(nG, G * S, G * NS)

    # P @ V: garbage lanes of P are exactly 0, so packed (G*NS)-deep contraction is exact.
    attn = jnp.einsum("gnm,gme->gne", pn.astype(mxu), Vg,
                      preferred_element_type=jnp.float32)            # [nG, G*S, H]

    attended = jnp.dot(attn.reshape(bt * S, HIDDEN_DIM).astype(mxu), wo_ref[...],
                       preferred_element_type=jnp.float32) + bo_ref[...]
    att3 = attended.reshape(bt, S, HIDDEN_DIM)                       # [BT, S, H] f32

    # --- pooling_attention: Linear(H,1) + Softmax over seq; weighted sum over seq ---
    logits = jnp.sum(att3 * wp_ref[...], axis=-1, keepdims=True) + bp_ref[...]   # [BT, S, 1]
    lmax = jnp.max(logits, axis=1, keepdims=True)
    e = jnp.exp(logits - lmax)
    num = jnp.sum(att3 * e, axis=1)                                  # [BT, H]
    den = jnp.sum(e, axis=1)                                         # [BT, 1]
    pooled = num * recip(den)

    # --- output_projection: Linear -> LayerNorm (Dropout = identity) ---
    o = jnp.dot(pooled.astype(mxu), w2_ref[...],
                preferred_element_type=jnp.float32) + b2_ref[...]    # [BT, OUTPUT]
    out_ref[...] = _layernorm(o, g2_ref[...], be2_ref[...]).astype(out_ref.dtype)


def init_params(key):
    ks = jax.random.split(key, 8)
    s = 0.1
    return dict(
        w1=jax.random.normal(ks[0], (INPUT_DIM, HIDDEN_DIM), jnp.float32) * s,
        b1=jax.random.normal(ks[1], (1, HIDDEN_DIM), jnp.float32) * s,
        g1=jnp.ones((1, HIDDEN_DIM), jnp.float32),
        be1=jnp.zeros((1, HIDDEN_DIM), jnp.float32),
        wqkv=jax.random.normal(ks[2], (HIDDEN_DIM, 3 * HIDDEN_DIM), jnp.float32) * s,
        bqkv=jax.random.normal(ks[3], (1, 3 * HIDDEN_DIM), jnp.float32) * s,
        wo=jax.random.normal(ks[4], (HIDDEN_DIM, HIDDEN_DIM), jnp.float32) * s,
        bo=jnp.zeros((1, HIDDEN_DIM), jnp.float32),
        wp=jax.random.normal(ks[5], (1, HIDDEN_DIM), jnp.float32) * s,
        bp=jnp.zeros((1, 1), jnp.float32),
        w2=jax.random.normal(ks[6], (HIDDEN_DIM, OUTPUT_DIM), jnp.float32) * s,
        b2=jax.random.normal(ks[7], (1, OUTPUT_DIM), jnp.float32) * s,
        g2=jnp.ones((1, OUTPUT_DIM), jnp.float32),
        be2=jnp.zeros((1, OUTPUT_DIM), jnp.float32),
    )


def composition_encoder(x, params, *, block_b=256, mxu_dtype=jnp.bfloat16):
    """x: [batch, num_elements] or [batch, seq, num_elements] -> [batch, OUTPUT_DIM]."""
    if x.ndim == 2:
        x = x[:, None, :]
    B, S, E = x.shape
    assert E == INPUT_DIM

    # Batch tile: multiple of 8; force >=2 grid steps when the batch allows it so the
    # "parallel" grid axis can shard across v7x's two TensorCores.
    if B >= 16:
        half = _round_up((B + 1) // 2, 8)
        bt = min(_round_up(block_b, 8), half)
    else:
        bt = _round_up(B, 8)
    bt = max(bt, 8)
    Bp = _round_up(B, bt)
    nb = Bp // bt
    if Bp != B:
        x = jnp.pad(x, ((0, Bp - B), (0, 0), (0, 0)))    # padded rows sliced off at the end
    x = x.astype(mxu_dtype)   # stream activations at MXU precision (halves DMA for bf16)

    G = _pick_group(bt, S)
    NS = NUM_HEADS * S
    f32 = jnp.float32

    # ---- host-side constants / pre-cast weights (resident via constant index_maps) ----
    scale = 1.0 / math.sqrt(HEAD_DIM)
    p = params
    wqkv = p["wqkv"].astype(f32).at[:, :HIDDEN_DIM].multiply(scale)   # fold 1/sqrt(d) into Q
    bqkv = p["bqkv"].astype(f32).at[:, :HIDDEN_DIM].multiply(scale)

    rows = jnp.arange(NS)[:, None]
    cols = jnp.arange(HIDDEN_DIM)[None, :]
    kv_mask = (rows // S == cols // HEAD_DIM).astype(mxu_dtype)            # [NS, H]

    rn = jnp.arange(G * S)[:, None] // S
    cm = jnp.arange(G * NS)[None, :] // NS
    neg_mask = jnp.where(rn == cm, 0.0, -1e30).astype(f32)                 # [G*S, G*NS]

    bi = jnp.arange(G * NS)
    block_ones = (bi[:, None] // S == bi[None, :] // S).astype(mxu_dtype)  # [G*NS, G*NS]

    weights = (
        p["w1"].astype(mxu_dtype), p["b1"].astype(f32), p["g1"].astype(f32), p["be1"].astype(f32),
        wqkv.astype(mxu_dtype), bqkv,
        p["wo"].astype(mxu_dtype), p["bo"].astype(f32),
        p["wp"].astype(f32), p["bp"].astype(f32),
        p["w2"].astype(mxu_dtype), p["b2"].astype(f32), p["g2"].astype(f32), p["be2"].astype(f32),
        kv_mask, neg_mask, block_ones,
    )

    in_specs = [pl.BlockSpec((bt, S, INPUT_DIM), lambda b: (b, 0, 0))]
    # Weights / constants: full blocks + constant index maps -> DMA'd once, resident.
    in_specs += [pl.BlockSpec(w.shape, lambda b: (0, 0)) for w in weights]

    gns = G * NS
    flops_per_ex = (2 * S * (INPUT_DIM * HIDDEN_DIM + 4 * HIDDEN_DIM * HIDDEN_DIM
                             + gns * (2 * HIDDEN_DIM + gns))
                    + 2 * HIDDEN_DIM * OUTPUT_DIM)
    weight_bytes = sum(int(w.size) * w.dtype.itemsize for w in weights)
    cost = pl.CostEstimate(
        flops=int(Bp * flops_per_ex),
        transcendentals=int(Bp * (S * gns + S + 2)),
        bytes_accessed=int(Bp * (S * INPUT_DIM * jnp.dtype(mxu_dtype).itemsize
                                 + OUTPUT_DIM * 4) + weight_bytes),
    )

    kernel = functools.partial(
        composition_encoder_kernel, bt=bt, seq=S, group=G,
        approx_recip=(mxu_dtype != jnp.float32))

    out = pl.pallas_call(
        kernel,
        out_shape=jax.ShapeDtypeStruct((Bp, OUTPUT_DIM), jnp.float32),
        grid_spec=pltpu.PrefetchScalarGridSpec(
            num_scalar_prefetch=0,
            grid=(nb,),
            in_specs=in_specs,
            out_specs=pl.BlockSpec((bt, OUTPUT_DIM), lambda b: (b, 0)),
        ),
        compiler_params=pltpu.CompilerParams(
            dimension_semantics=("parallel",),
            vmem_limit_bytes=32 << 20),
        cost_estimate=cost,
    )(x, *weights)
    return out[:B]


def composition_encoder_ref(x, p):
    """Pure-JAX f32 reference mirroring the PyTorch forward (eval mode)."""
    if x.ndim == 2:
        x = x[:, None, :]
    x = x.astype(jnp.float32)
    h = x @ p["w1"] + p["b1"]
    h = _layernorm(h, p["g1"], p["be1"])
    h = jnp.maximum(h, 0.0)
    qkv = h @ p["wqkv"] + p["bqkv"]
    q, k, v = jnp.split(qkv, 3, axis=-1)
    B, S, _ = q.shape
    qh = q.reshape(B, S, NUM_HEADS, HEAD_DIM).transpose(0, 2, 1, 3)
    kh = k.reshape(B, S, NUM_HEADS, HEAD_DIM).transpose(0, 2, 1, 3)
    vh = v.reshape(B, S, NUM_HEADS, HEAD_DIM).transpose(0, 2, 1, 3)
    s = jnp.einsum("bhqd,bhkd->bhqk", qh, kh) / math.sqrt(HEAD_DIM)
    pr = jax.nn.softmax(s, axis=-1)
    a = jnp.einsum("bhqk,bhkd->bhqd", pr, vh).transpose(0, 2, 1, 3).reshape(B, S, HIDDEN_DIM)
    attended = a @ p["wo"] + p["bo"]
    logits = jnp.sum(attended * p["wp"], axis=-1, keepdims=True) + p["bp"]
    w = jax.nn.softmax(logits, axis=1)
    pooled = jnp.sum(attended * w, axis=1)
    o = pooled @ p["w2"] + p["b2"]
    return _layernorm(o, p["g2"], p["be2"])


if __name__ == "__main__":
    key = jax.random.PRNGKey(0)
    kx, kp = jax.random.split(key)
    batch, seq = 2, 8
    x = jax.random.uniform(kx, (batch, seq, INPUT_DIM), jnp.float32)
    params = init_params(kp)
    ref = composition_encoder_ref(x, params)

    # f32 MXU path (exact divides): tight tolerance vs the f32 reference.
    out_f32 = jax.block_until_ready(
        composition_encoder(x, params, mxu_dtype=jnp.float32))
    assert out_f32.shape == (batch, OUTPUT_DIM)
    assert jnp.allclose(out_f32, ref, atol=1e-3, rtol=1e-3), \
        float(jnp.max(jnp.abs(out_f32 - ref)))

    # Default perf path (bf16 MXU operands + approx reciprocals): loose sanity tolerance.
    out_bf16 = jax.block_until_ready(composition_encoder(x, params))
    assert jnp.allclose(out_bf16, ref, atol=1.5e-1, rtol=1.5e-1), \
        float(jnp.max(jnp.abs(out_bf16 - ref)))

    # Multi-step grid + batch padding + group-packing path (B not a multiple of the tile).
    xb = jax.random.uniform(jax.random.PRNGKey(1), (20, seq, INPUT_DIM), jnp.float32)
    refb = composition_encoder_ref(xb, params)
    outb = jax.block_until_ready(
        composition_encoder(xb, params, block_b=8, mxu_dtype=jnp.float32))
    assert jnp.allclose(outb, refb, atol=1e-3, rtol=1e-3), \
        float(jnp.max(jnp.abs(outb - refb)))

    # 2-D composition-vector input ([batch, num_elements], seq_len == 1) path.
    x2d = jax.random.uniform(jax.random.PRNGKey(2), (4, INPUT_DIM), jnp.float32)
    ref2d = composition_encoder_ref(x2d, params)
    out2d = jax.block_until_ready(
        composition_encoder(x2d, params, mxu_dtype=jnp.float32))
    assert jnp.allclose(out2d, ref2d, atol=1e-3, rtol=1e-3), \
        float(jnp.max(jnp.abs(out2d - ref2d)))

    print("KERNEL_OK")
</pallas_src>

<mosaic_0001>
module attributes {stable_mosaic.version = 11 : i64} {
  func.func @composition_encoder_kernel(%arg0: i32, %arg1: memref<8x8x32xf32, #tpu.memory_space<vmem>>, %arg2: memref<32x32xf32, #tpu.memory_space<vmem>>, %arg3: memref<1x32xf32, #tpu.memory_space<vmem>>, %arg4: memref<1x32xf32, #tpu.memory_space<vmem>>, %arg5: memref<1x32xf32, #tpu.memory_space<vmem>>, %arg6: memref<32x96xf32, #tpu.memory_space<vmem>>, %arg7: memref<1x96xf32, #tpu.memory_space<vmem>>, %arg8: memref<32x32xf32, #tpu.memory_space<vmem>>, %arg9: memref<1x32xf32, #tpu.memory_space<vmem>>, %arg10: memref<1x32xf32, #tpu.memory_space<vmem>>, %arg11: memref<1x1xf32, #tpu.memory_space<vmem>>, %arg12: memref<32x64xf32, #tpu.memory_space<vmem>>, %arg13: memref<1x64xf32, #tpu.memory_space<vmem>>, %arg14: memref<1x64xf32, #tpu.memory_space<vmem>>, %arg15: memref<1x64xf32, #tpu.memory_space<vmem>>, %arg16: memref<32x32xf32, #tpu.memory_space<vmem>>, %arg17: memref<64x256xf32, #tpu.memory_space<vmem>>, %arg18: memref<256x256xf32, #tpu.memory_space<vmem>>, %arg19: memref<8x64xf32, #tpu.memory_space<vmem>>) attributes {dimension_semantics = [#tpu.dimension_semantics<parallel>], iteration_bounds = array<i64: 1>, scalar_prefetch = 0 : i64, scratch_operands = 0 : i64, tpu.core_type = #tpu.core_type<tc>, window_params = [{transform_indices = @transform_0, window_bounds = array<i64: 8, 8, 32>}, {pipeline_mode = #tpu.pipeline_mode<synchronous>, transform_indices = @transform_1, window_bounds = array<i64: 32, 32>}, {pipeline_mode = #tpu.pipeline_mode<synchronous>, transform_indices = @transform_2, window_bounds = array<i64: 1, 32>}, {pipeline_mode = #tpu.pipeline_mode<synchronous>, transform_indices = @transform_3, window_bounds = array<i64: 1, 32>}, {pipeline_mode = #tpu.pipeline_mode<synchronous>, transform_indices = @transform_4, window_bounds = array<i64: 1, 32>}, {pipeline_mode = #tpu.pipeline_mode<synchronous>, transform_indices = @transform_5, window_bounds = array<i64: 32, 96>}, {pipeline_mode = #tpu.pipeline_mode<synchronous>, transform_indices = @transform_6, window_bounds = array<i64: 1, 96>}, {pipeline_mode = #tpu.pipeline_mode<synchronous>, transform_indices = @transform_7, window_bounds = array<i64: 32, 32>}, {pipeline_mode = #tpu.pipeline_mode<synchronous>, transform_indices = @transform_8, window_bounds = array<i64: 1, 32>}, {pipeline_mode = #tpu.pipeline_mode<synchronous>, transform_indices = @transform_9, window_bounds = array<i64: 1, 32>}, {pipeline_mode = #tpu.pipeline_mode<synchronous>, transform_indices = @transform_10, window_bounds = array<i64: 1, 1>}, {pipeline_mode = #tpu.pipeline_mode<synchronous>, transform_indices = @transform_11, window_bounds = array<i64: 32, 64>}, {pipeline_mode = #tpu.pipeline_mode<synchronous>, transform_indices = @transform_12, window_bounds = array<i64: 1, 64>}, {pipeline_mode = #tpu.pipeline_mode<synchronous>, transform_indices = @transform_13, window_bounds = array<i64: 1, 64>}, {pipeline_mode = #tpu.pipeline_mode<synchronous>, transform_indices = @transform_14, window_bounds = array<i64: 1, 64>}, {pipeline_mode = #tpu.pipeline_mode<synchronous>, transform_indices = @transform_15, window_bounds = array<i64: 32, 32>}, {pipeline_mode = #tpu.pipeline_mode<synchronous>, transform_indices = @transform_16, window_bounds = array<i64: 64, 256>}, {pipeline_mode = #tpu.pipeline_mode<synchronous>, transform_indices = @transform_17, window_bounds = array<i64: 256, 256>}, {transform_indices = @transform_18, window_bounds = array<i64: 8, 64>}]} {
    %c0 = arith.constant 0 : index
    %c0_0 = arith.constant 0 : index
    %c0_1 = arith.constant 0 : index
    %0 = vector.load %arg1[%c0, %c0_0, %c0_1] : memref<8x8x32xf32, #tpu.memory_space<vmem>>, vector<8x8x32xf32>
    %1 = vector.shape_cast %0 : vector<8x8x32xf32> to vector<64x32xf32>
    %c0_2 = arith.constant 0 : index
    %c0_3 = arith.constant 0 : index
    %2 = vector.load %arg2[%c0_2, %c0_3] : memref<32x32xf32, #tpu.memory_space<vmem>>, vector<32x32xf32>
    %cst = arith.constant dense<0.000000e+00> : vector<64x32xf32>
    %3 = tpu.matmul %1, %2, %cst {dimension_numbers = #tpu.dot_dimension_numbers<[1], [0], [0], [1], [0, 0, 1, 1], [], []>} : vector<64x32xf32>, vector<32x32xf32>, vector<64x32xf32> -> vector<64x32xf32>
    %c0_4 = arith.constant 0 : index
    %c0_5 = arith.constant 0 : index
    %4 = vector.load %arg3[%c0_4, %c0_5] : memref<1x32xf32, #tpu.memory_space<vmem>>, vector<1x32xf32>
    %5 = vector.broadcast %4 : vector<1x32xf32> to vector<64x32xf32>
    %6 = arith.addf %3, %5 : vector<64x32xf32>
    %c0_6 = arith.constant 0 : index
    %c0_7 = arith.constant 0 : index
    %7 = vector.load %arg4[%c0_6, %c0_7] : memref<1x32xf32, #tpu.memory_space<vmem>>, vector<1x32xf32>
    %c0_8 = arith.constant 0 : index
    %c0_9 = arith.constant 0 : index
    %8 = vector.load %arg5[%c0_8, %c0_9] : memref<1x32xf32, #tpu.memory_space<vmem>>, vector<1x32xf32>
    %cst_10 = arith.constant dense<0.000000e+00> : vector<64xf32>
    %9 = vector.multi_reduction <add>, %6, %cst_10 [1] : vector<64x32xf32> to vector<64xf32>
    %10 = vector.shape_cast %9 : vector<64xf32> to vector<64x1xf32>
    %cst_11 = arith.constant 3.200000e+01 : f32
    %11 = vector.broadcast %cst_11 : f32 to vector<64x1xf32>
    %12 = arith.divf %10, %11 : vector<64x1xf32>
    %13 = vector.broadcast %12 : vector<64x1xf32> to vector<64x32xf32>
    %14 = arith.subf %6, %13 : vector<64x32xf32>
    %15 = arith.mulf %14, %14 : vector<64x32xf32>
    %cst_12 = arith.constant dense<0.000000e+00> : vector<64xf32>
    %16 = vector.multi_reduction <add>, %15, %cst_12 [1] : vector<64x32xf32> to vector<64xf32>
    %17 = vector.shape_cast %16 : vector<64xf32> to vector<64x1xf32>
    %cst_13 = arith.constant 3.200000e+01 : f32
    %18 = vector.broadcast %cst_13 : f32 to vector<64x1xf32>
    %19 = arith.divf %17, %18 : vector<64x1xf32>
    %20 = vector.broadcast %12 : vector<64x1xf32> to vector<64x32xf32>
    %21 = arith.subf %6, %20 : vector<64x32xf32>
    %cst_14 = arith.constant 9.99999974E-6 : f32
    %22 = vector.broadcast %cst_14 : f32 to vector<64x1xf32>
    %23 = arith.addf %19, %22 : vector<64x1xf32>
    %24 = math.rsqrt %23 : vector<64x1xf32>
    %25 = vector.broadcast %24 : vector<64x1xf32> to vector<64x32xf32>
    %26 = arith.mulf %21, %25 : vector<64x32xf32>
    %27 = vector.broadcast %7 : vector<1x32xf32> to vector<64x32xf32>
    %28 = arith.mulf %26, %27 : vector<64x32xf32>
    %29 = vector.broadcast %8 : vector<1x32xf32> to vector<64x32xf32>
    %30 = arith.addf %28, %29 : vector<64x32xf32>
    %cst_15 = arith.constant 0.000000e+00 : f32
    %31 = vector.broadcast %cst_15 : f32 to vector<64x32xf32>
    %32 = arith.maximumf %30, %31 : vector<64x32xf32>
    %c0_16 = arith.constant 0 : index
    %c0_17 = arith.constant 0 : index
    %33 = vector.load %arg6[%c0_16, %c0_17] : memref<32x96xf32, #tpu.memory_space<vmem>>, vector<32x96xf32>
    %cst_18 = arith.constant dense<0.000000e+00> : vector<64x96xf32>
    %34 = tpu.matmul %32, %33, %cst_18 {dimension_numbers = #tpu.dot_dimension_numbers<[1], [0], [0], [1], [0, 0, 1, 1], [], []>} : vector<64x32xf32>, vector<32x96xf32>, vector<64x96xf32> -> vector<64x96xf32>
    %c0_19 = arith.constant 0 : index
    %c0_20 = arith.constant 0 : index
    %35 = vector.load %arg7[%c0_19, %c0_20] : memref<1x96xf32, #tpu.memory_space<vmem>>, vector<1x96xf32>
    %36 = vector.broadcast %35 : vector<1x96xf32> to vector<64x96xf32>
    %37 = arith.addf %34, %36 : vector<64x96xf32>
    %38 = vector.extract_strided_slice %37 {offsets = [0, 0], sizes = [64, 32], strides = [1, 1]} : vector<64x96xf32> to vector<64x32xf32>
    %39 = vector.extract_strided_slice %37 {offsets = [0, 32], sizes = [64, 32], strides = [1, 1]} : vector<64x96xf32> to vector<64x32xf32>
    %40 = vector.shape_cast %39 : vector<64x32xf32> to vector<8x8x32xf32>
    %41 = vector.extract_strided_slice %37 {offsets = [0, 64], sizes = [64, 32], strides = [1, 1]} : vector<64x96xf32> to vector<64x32xf32>
    %42 = vector.shape_cast %41 : vector<64x32xf32> to vector<8x8x32xf32>
    %43 = tpu.concatenate %40, %40, %40, %40 in 1 : vector<8x8x32xf32>, vector<8x8x32xf32>, vector<8x8x32xf32>, vector<8x8x32xf32> -> vector<8x32x32xf32>
    %c0_21 = arith.constant 0 : index
    %c0_22 = arith.constant 0 : index
    %44 = vector.load %arg16[%c0_21, %c0_22] : memref<32x32xf32, #tpu.memory_space<vmem>>, vector<32x32xf32>
    %45 = vector.shape_cast %44 : vector<32x32xf32> to vector<1x32x32xf32>
    %46 = vector.broadcast %45 : vector<1x32x32xf32> to vector<8x32x32xf32>
    %47 = arith.mulf %43, %46 : vector<8x32x32xf32>
    %48 = tpu.concatenate %42, %42, %42, %42 in 1 : vector<8x8x32xf32>, vector<8x8x32xf32>, vector<8x8x32xf32>, vector<8x8x32xf32> -> vector<8x32x32xf32>
    %c0_23 = arith.constant 0 : index
    %c0_24 = arith.constant 0 : index
    %49 = vector.load %arg16[%c0_23, %c0_24] : memref<32x32xf32, #tpu.memory_space<vmem>>, vector<32x32xf32>
    %50 = vector.shape_cast %49 : vector<32x32xf32> to vector<1x32x32xf32>
    %51 = vector.broadcast %50 : vector<1x32x32xf32> to vector<8x32x32xf32>
    %52 = arith.mulf %48, %51 : vector<8x32x32xf32>
    %53 = vector.shape_cast %38 : vector<64x32xf32> to vector<1x64x32xf32>
    %54 = vector.shape_cast %47 : vector<8x32x32xf32> to vector<1x256x32xf32>
    %55 = vector.shape_cast %52 : vector<8x32x32xf32> to vector<1x256x32xf32>
    "tpu.trace_start"() <{level = 10 : i32, message = "gne,gme->gnm"}> : () -> ()
    %cst_25 = arith.constant dense<0.000000e+00> : vector<1x64x256xf32>
    %56 = tpu.matmul %53, %54, %cst_25 {dimension_numbers = #tpu.dot_dimension_numbers<[2], [2], [1], [1], [0, 0, 0, 1, 1, 1], [0], [0]>} : vector<1x64x32xf32>, vector<1x256x32xf32>, vector<1x64x256xf32> -> vector<1x64x256xf32>
    "tpu.trace_stop"() : () -> ()
    %c0_26 = arith.constant 0 : index
    %c0_27 = arith.constant 0 : index
    %57 = vector.load %arg17[%c0_26, %c0_27] : memref<64x256xf32, #tpu.memory_space<vmem>>, vector<64x256xf32>
    %58 = vector.shape_cast %57 : vector<64x256xf32> to vector<1x64x256xf32>
    %59 = arith.addf %56, %58 : vector<1x64x256xf32>
    %cst_28 = arith.constant dense<0xFF800000> : vector<1x64xf32>
    %60 = vector.multi_reduction <maximumf>, %59, %cst_28 [2] : vector<1x64x256xf32> to vector<1x64xf32>
    %61 = vector.shape_cast %60 : vector<1x64xf32> to vector<1x64x1xf32>
    %62 = vector.broadcast %61 : vector<1x64x1xf32> to vector<1x64x256xf32>
    %63 = arith.subf %59, %62 : vector<1x64x256xf32>
    %64 = math.exp %63 : vector<1x64x256xf32>
    %65 = vector.shape_cast %64 : vector<1x64x256xf32> to vector<64x256xf32>
    %c0_29 = arith.constant 0 : index
    %c0_30 = arith.constant 0 : index
    %66 = vector.load %arg18[%c0_29, %c0_30] : memref<256x256xf32, #tpu.memory_space<vmem>>, vector<256x256xf32>
    %cst_31 = arith.constant dense<0.000000e+00> : vector<64x256xf32>
    %67 = tpu.matmul %65, %66, %cst_31 {dimension_numbers = #tpu.dot_dimension_numbers<[1], [0], [0], [1], [0, 0, 1, 1], [], []>} : vector<64x256xf32>, vector<256x256xf32>, vector<64x256xf32> -> vector<64x256xf32>
    %cst_32 = arith.constant 1.000000e-30 : f32
    %68 = vector.broadcast %cst_32 : f32 to vector<64x256xf32>
    %69 = arith.addf %67, %68 : vector<64x256xf32>
    %cst_33 = arith.constant 1.000000e+00 : f32
    %70 = vector.broadcast %cst_33 : f32 to vector<64x256xf32>
    %71 = arith.divf %70, %69 : vector<64x256xf32>
    %72 = arith.mulf %65, %71 : vector<64x256xf32>
    %73 = vector.shape_cast %72 : vector<64x256xf32> to vector<1x64x256xf32>
    "tpu.trace_start"() <{level = 10 : i32, message = "gnm,gme->gne"}> : () -> ()
    %cst_34 = arith.constant dense<0.000000e+00> : vector<1x64x32xf32>
    %74 = tpu.matmul %73, %55, %cst_34 {dimension_numbers = #tpu.dot_dimension_numbers<[2], [1], [1], [2], [0, 0, 0, 1, 1, 2], [0], [0]>} : vector<1x64x256xf32>, vector<1x256x32xf32>, vector<1x64x32xf32> -> vector<1x64x32xf32>
    "tpu.trace_stop"() : () -> ()
    %75 = vector.shape_cast %74 : vector<1x64x32xf32> to vector<64x32xf32>
    %c0_35 = arith.constant 0 : index
    %c0_36 = arith.constant 0 : index
    %76 = vector.load %arg8[%c0_35, %c0_36] : memref<32x32xf32, #tpu.memory_space<vmem>>, vector<32x32xf32>
    %cst_37 = arith.constant dense<0.000000e+00> : vector<64x32xf32>
    %77 = tpu.matmul %75, %76, %cst_37 {dimension_numbers = #tpu.dot_dimension_numbers<[1], [0], [0], [1], [0, 0, 1, 1], [], []>} : vector<64x32xf32>, vector<32x32xf32>, vector<64x32xf32> -> vector<64x32xf32>
    %c0_38 = arith.constant 0 : index
    %c0_39 = arith.constant 0 : index
    %78 = vector.load %arg9[%c0_38, %c0_39] : memref<1x32xf32, #tpu.memory_space<vmem>>, vector<1x32xf32>
    %79 = vector.broadcast %78 : vector<1x32xf32> to vector<64x32xf32>
    %80 = arith.addf %77, %79 : vector<64x32xf32>
    %81 = vector.shape_cast %80 : vector<64x32xf32> to vector<8x8x32xf32>
    %c0_40 = arith.constant 0 : index
    %c0_41 = arith.constant 0 : index
    %82 = vector.load %arg10[%c0_40, %c0_41] : memref<1x32xf32, #tpu.memory_space<vmem>>, vector<1x32xf32>
    %83 = vector.shape_cast %82 : vector<1x32xf32> to vector<1x1x32xf32>
    %84 = vector.broadcast %83 : vector<1x1x32xf32> to vector<8x8x32xf32>
    %85 = arith.mulf %81, %84 : vector<8x8x32xf32>
    %cst_42 = arith.constant dense<0.000000e+00> : vector<8x8xf32>
    %86 = vector.multi_reduction <add>, %85, %cst_42 [2] : vector<8x8x32xf32> to vector<8x8xf32>
    %87 = vector.shape_cast %86 : vector<8x8xf32> to vector<8x8x1xf32>
    %c0_43 = arith.constant 0 : index
    %c0_44 = arith.constant 0 : index
    %88 = vector.load %arg11[%c0_43, %c0_44] : memref<1x1xf32, #tpu.memory_space<vmem>>, vector<1x1xf32>
    %89 = vector.shape_cast %88 : vector<1x1xf32> to vector<1x1x1xf32>
    %90 = vector.broadcast %89 : vector<1x1x1xf32> to vector<8x8x1xf32>
    %91 = arith.addf %87, %90 : vector<8x8x1xf32>
    %cst_45 = arith.constant dense<0xFF800000> : vector<8x1xf32>
    %92 = vector.multi_reduction <maximumf>, %91, %cst_45 [1] : vector<8x8x1xf32> to vector<8x1xf32>
    %93 = vector.shape_cast %92 : vector<8x1xf32> to vector<8x1x1xf32>
    %94 = vector.broadcast %93 : vector<8x1x1xf32> to vector<8x8x1xf32>
    %95 = arith.subf %91, %94 : vector<8x8x1xf32>
    %96 = math.exp %95 : vector<8x8x1xf32>
    %97 = vector.broadcast %96 : vector<8x8x1xf32> to vector<8x8x32xf32>
    %98 = arith.mulf %81, %97 : vector<8x8x32xf32>
    %cst_46 = arith.constant dense<0.000000e+00> : vector<8x32xf32>
    %99 = vector.multi_reduction <add>, %98, %cst_46 [1] : vector<8x8x32xf32> to vector<8x32xf32>
    %cst_47 = arith.constant dense<0.000000e+00> : vector<8x1xf32>
    %100 = vector.multi_reduction <add>, %96, %cst_47 [1] : vector<8x8x1xf32> to vector<8x1xf32>
    %cst_48 = arith.constant 1.000000e+00 : f32
    %101 = vector.broadcast %cst_48 : f32 to vector<8x1xf32>
    %102 = arith.divf %101, %100 : vector<8x1xf32>
    %103 = vector.broadcast %102 : vector<8x1xf32> to vector<8x32xf32>
    %104 = arith.mulf %99, %103 : vector<8x32xf32>
    %c0_49 = arith.constant 0 : index
    %c0_50 = arith.constant 0 : index
    %105 = vector.load %arg12[%c0_49, %c0_50] : memref<32x64xf32, #tpu.memory_space<vmem>>, vector<32x64xf32>
    %cst_51 = arith.constant dense<0.000000e+00> : vector<8x64xf32>
    %106 = tpu.matmul %104, %105, %cst_51 {dimension_numbers = #tpu.dot_dimension_numbers<[1], [0], [0], [1], [0, 0, 1, 1], [], []>} : vector<8x32xf32>, vector<32x64xf32>, vector<8x64xf32> -> vector<8x64xf32>
    %c0_52 = arith.constant 0 : index
    %c0_53 = arith.constant 0 : index
    %107 = vector.load %arg13[%c0_52, %c0_53] : memref<1x64xf32, #tpu.memory_space<vmem>>, vector<1x64xf32>
    %108 = vector.broadcast %107 : vector<1x64xf32> to vector<8x64xf32>
    %109 = arith.addf %106, %108 : vector<8x64xf32>
    %c0_54 = arith.constant 0 : index
    %c0_55 = arith.constant 0 : index
    %110 = vector.load %arg14[%c0_54, %c0_55] : memref<1x64xf32, #tpu.memory_space<vmem>>, vector<1x64xf32>
    %c0_56 = arith.constant 0 : index
    %c0_57 = arith.constant 0 : index
    %111 = vector.load %arg15[%c0_56, %c0_57] : memref<1x64xf32, #tpu.memory_space<vmem>>, vector<1x64xf32>
    %cst_58 = arith.constant dense<0.000000e+00> : vector<8xf32>
    %112 = vector.multi_reduction <add>, %109, %cst_58 [1] : vector<8x64xf32> to vector<8xf32>
    %113 = vector.shape_cast %112 : vector<8xf32> to vector<8x1xf32>
    %cst_59 = arith.constant 6.400000e+01 : f32
    %114 = vector.broadcast %cst_59 : f32 to vector<8x1xf32>
    %115 = arith.divf %113, %114 : vector<8x1xf32>
    %116 = vector.broadcast %115 : vector<8x1xf32> to vector<8x64xf32>
    %117 = arith.subf %109, %116 : vector<8x64xf32>
    %118 = arith.mulf %117, %117 : vector<8x64xf32>
    %cst_60 = arith.constant dense<0.000000e+00> : vector<8xf32>
    %119 = vector.multi_reduction <add>, %118, %cst_60 [1] : vector<8x64xf32> to vector<8xf32>
    %120 = vector.shape_cast %119 : vector<8xf32> to vector<8x1xf32>
    %cst_61 = arith.constant 6.400000e+01 : f32
    %121 = vector.broadcast %cst_61 : f32 to vector<8x1xf32>
    %122 = arith.divf %120, %121 : vector<8x1xf32>
    %123 = vector.broadcast %115 : vector<8x1xf32> to vector<8x64xf32>
    %124 = arith.subf %109, %123 : vector<8x64xf32>
    %cst_62 = arith.constant 9.99999974E-6 : f32
    %125 = vector.broadcast %cst_62 : f32 to vector<8x1xf32>
    %126 = arith.addf %122, %125 : vector<8x1xf32>
    %127 = math.rsqrt %126 : vector<8x1xf32>
    %128 = vector.broadcast %127 : vector<8x1xf32> to vector<8x64xf32>
    %129 = arith.mulf %124, %128 : vector<8x64xf32>
    %130 = vector.broadcast %110 : vector<1x64xf32> to vector<8x64xf32>
    %131 = arith.mulf %129, %130 : vector<8x64xf32>
    %132 = vector.broadcast %111 : vector<1x64xf32> to vector<8x64xf32>
    %133 = arith.addf %131, %132 : vector<8x64xf32>
    %c0_63 = arith.constant 0 : index
    %c0_64 = arith.constant 0 : index
    %134 = vector.load %arg19[%c0_63, %c0_64] : memref<8x64xf32, #tpu.memory_space<vmem>>, vector<8x64xf32>
    tpu.vector_store %arg19[%c0_63, %c0_64], %133 {strides = array<i32>} : memref<8x64xf32, #tpu.memory_space<vmem>>, vector<8x64xf32>,
    return
  }
  func.func @transform_0(%arg0: i32) -> (i32, i32, i32) {
    %c0_i32 = arith.constant 0 : i32
    %c0_i32_0 = arith.constant 0 : i32
    %c0_i32_1 = arith.constant 0 : i32
    return %arg0, %c0_i32, %c0_i32_0 : i32, i32, i32
  }
  func.func @transform_1(%arg0: i32) -> (i32, i32) {
    %c0_i32 = arith.constant 0 : i32
    %c0_i32_0 = arith.constant 0 : i32
    %c0_i32_1 = arith.constant 0 : i32
    return %c0_i32, %c0_i32_0 : i32, i32
  }
  func.func @transform_2(%arg0: i32) -> (i32, i32) {
    %c0_i32 = arith.constant 0 : i32
    %c0_i32_0 = arith.constant 0 : i32
    %c0_i32_1 = arith.constant 0 : i32
    return %c0_i32, %c0_i32_0 : i32, i32
  }
  func.func @transform_3(%arg0: i32) -> (i32, i32) {
    %c0_i32 = arith.constant 0 : i32
    %c0_i32_0 = arith.constant 0 : i32
    %c0_i32_1 = arith.constant 0 : i32
    return %c0_i32, %c0_i32_0 : i32, i32
  }
  func.func @transform_4(%arg0: i32) -> (i32, i32) {
    %c0_i32 = arith.constant 0 : i32
    %c0_i32_0 = arith.constant 0 : i32
    %c0_i32_1 = arith.constant 0 : i32
    return %c0_i32, %c0_i32_0 : i32, i32
  }
  func.func @transform_5(%arg0: i32) -> (i32, i32) {
    %c0_i32 = arith.constant 0 : i32
    %c0_i32_0 = arith.constant 0 : i32
    %c0_i32_1 = arith.constant 0 : i32
    return %c0_i32, %c0_i32_0 : i32, i32
  }
  func.func @transform_6(%arg0: i32) -> (i32, i32) {
    %c0_i32 = arith.constant 0 : i32
    %c0_i32_0 = arith.constant 0 : i32
    %c0_i32_1 = arith.constant 0 : i32
    return %c0_i32, %c0_i32_0 : i32, i32
  }
  func.func @transform_7(%arg0: i32) -> (i32, i32) {
    %c0_i32 = arith.constant 0 : i32
    %c0_i32_0 = arith.constant 0 : i32
    %c0_i32_1 = arith.constant 0 : i32
    return %c0_i32, %c0_i32_0 : i32, i32
  }
  func.func @transform_8(%arg0: i32) -> (i32, i32) {
    %c0_i32 = arith.constant 0 : i32
    %c0_i32_0 = arith.constant 0 : i32
    %c0_i32_1 = arith.constant 0 : i32
    return %c0_i32, %c0_i32_0 : i32, i32
  }
  func.func @transform_9(%arg0: i32) -> (i32, i32) {
    %c0_i32 = arith.constant 0 : i32
    %c0_i32_0 = arith.constant 0 : i32
    %c0_i32_1 = arith.constant 0 : i32
    return %c0_i32, %c0_i32_0 : i32, i32
  }
  func.func @transform_10(%arg0: i32) -> (i32, i32) {
    %c0_i32 = arith.constant 0 : i32
    %c0_i32_0 = arith.constant 0 : i32
    %c0_i32_1 = arith.constant 0 : i32
    return %c0_i32, %c0_i32_0 : i32, i32
  }
  func.func @transform_11(%arg0: i32) -> (i32, i32) {
    %c0_i32 = arith.constant 0 : i32
    %c0_i32_0 = arith.constant 0 : i32
    %c0_i32_1 = arith.constant 0 : i32
    return %c0_i32, %c0_i32_0 : i32, i32
  }
  func.func @transform_12(%arg0: i32) -> (i32, i32) {
    %c0_i32 = arith.constant 0 : i32
    %c0_i32_0 = arith.constant 0 : i32
    %c0_i32_1 = arith.constant 0 : i32
    return %c0_i32, %c0_i32_0 : i32, i32
  }
  func.func @transform_13(%arg0: i32) -> (i32, i32) {
    %c0_i32 = arith.constant 0 : i32
    %c0_i32_0 = arith.constant 0 : i32
    %c0_i32_1 = arith.constant 0 : i32
    return %c0_i32, %c0_i32_0 : i32, i32
  }
  func.func @transform_14(%arg0: i32) -> (i32, i32) {
    %c0_i32 = arith.constant 0 : i32
    %c0_i32_0 = arith.constant 0 : i32
    %c0_i32_1 = arith.constant 0 : i32
    return %c0_i32, %c0_i32_0 : i32, i32
  }
  func.func @transform_15(%arg0: i32) -> (i32, i32) {
    %c0_i32 = arith.constant 0 : i32
    %c0_i32_0 = arith.constant 0 : i32
    %c0_i32_1 = arith.constant 0 : i32
    return %c0_i32, %c0_i32_0 : i32, i32
  }
  func.func @transform_16(%arg0: i32) -> (i32, i32) {
    %c0_i32 = arith.constant 0 : i32
    %c0_i32_0 = arith.constant 0 : i32
    %c0_i32_1 = arith.constant 0 : i32
    return %c0_i32, %c0_i32_0 : i32, i32
  }
  func.func @transform_17(%arg0: i32) -> (i32, i32) {
    %c0_i32 = arith.constant 0 : i32
    %c0_i32_0 = arith.constant 0 : i32
    %c0_i32_1 = arith.constant 0 : i32
    return %c0_i32, %c0_i32_0 : i32, i32
  }
  func.func @transform_18(%arg0: i32) -> (i32, i32) {
    %c0_i32 = arith.constant 0 : i32
    %c0_i32_0 = arith.constant 0 : i32
    return %arg0, %c0_i32 : i32, i32
  }
}

</mosaic_0001>

<llo_original>
// kernel: tpu_custom_call.1
$region0: #{tpu_custom_call.1}
  #allocation0 [shape = 'u32[]', space=smem, size = 0x4, offset = 0x4, fixed_abs, tag = 'smem constant byte address 0x4 - core index']
  #allocation1 [shape = 'u32[144,128]{1,0:T(1,128)}', space=vmem, size = 0x12000, scoped, tag = 'internal scratch']
  #allocation2 [shape = 'f32[1,1]{1,0:T(1,128)S(1)}', space=vmem, size = 0x200, scoped, tag = 'scoped memory for tpu_custom_call.1']
  %s0 = inlined_call_operand.hbm [shape: f32[8,8,32], index: 0, kind: input, shape index: {}]
  %s1 = inlined_call_operand.hbm [shape: f32[32,32], index: 1, kind: input, shape index: {}]
  %s2 = inlined_call_operand.vmem [shape: f32[1,32], index: 2, kind: input, shape index: {}]
  %s3 = inlined_call_operand.vmem [shape: f32[1,32], index: 3, kind: input, shape index: {}]
  %s4 = inlined_call_operand.vmem [shape: f32[1,32], index: 4, kind: input, shape index: {}]
  %s5 = inlined_call_operand.hbm [shape: f32[32,96], index: 5, kind: input, shape index: {}]
  %s6 = inlined_call_operand.vmem [shape: f32[1,96], index: 6, kind: input, shape index: {}]
  %s7 = inlined_call_operand.hbm [shape: f32[32,32], index: 7, kind: input, shape index: {}]
  %s8 = inlined_call_operand.vmem [shape: f32[1,32], index: 8, kind: input, shape index: {}]
  %s9 = inlined_call_operand.vmem [shape: f32[1,32], index: 9, kind: input, shape index: {}]
  %s10 = inlined_call_operand.<no memory space> [shape: f32[1,1], index: 10, kind: input, shape index: {}]
  %s11 = inlined_call_operand.vmem [shape: f32[32,64], index: 11, kind: input, shape index: {}]
  %s12 = inlined_call_operand.vmem [shape: f32[1,64], index: 12, kind: input, shape index: {}]
  %s13 = inlined_call_operand.vmem [shape: f32[1,64], index: 13, kind: input, shape index: {}]
  %s14 = inlined_call_operand.vmem [shape: f32[1,64], index: 14, kind: input, shape index: {}]
  %s15 = inlined_call_operand.hbm [shape: f32[32,32], index: 15, kind: input, shape index: {}]
  %s16 = inlined_call_operand.hbm [shape: f32[64,256], index: 16, kind: input, shape index: {}]
  %s17 = inlined_call_operand.hbm [shape: f32[256,256], index: 17, kind: input, shape index: {}]
  %s18 = inlined_call_operand.hbm [shape: f32[8,64], index: 18, kind: output, shape index: {}]
  %s19 = sld [smem:[#allocation0]]
  $region110: #{tpu_custom_call.1} parent=0
    _
  %s21 = ssub.s32 1, %s19
  %s22 = scalar_select 0, %s21, %s19
  %v23 = vstv %s10
  %24 = vst [vmem:[#allocation2] sm:$0x1] %v23
  $region1: #{tpu_custom_call.1} parent=0
    #allocation3 [shape = 'u8[32768]{0}', space=vmem, size = 0x8000, scoped, tag = 'input window, operand 0, single buffered']
    #allocation4 [shape = 's32[1]{0}', space=sflag, size = 0x4, scoped, tag = 'scoped memory for tpu_custom_call.1']
    #allocation5 [shape = 's32[1]{0}', space=sflag, size = 0x4, scoped, tag = 'scoped memory for tpu_custom_call.1']
    #allocation6 [shape = 'u8[16384]{0}', space=vmem, size = 0x4000, scoped, tag = 'input window, operand 1, single buffered']
    #allocation7 [shape = 's32[1]{0}', space=sflag, size = 0x4, scoped, tag = 'scoped memory for tpu_custom_call.1']
    #allocation8 [shape = 'u8[16384]{0}', space=vmem, size = 0x4000, scoped, tag = 'input window, operand 5, single buffered']
    #allocation9 [shape = 'u8[16384]{0}', space=vmem, size = 0x4000, scoped, tag = 'input window, operand 7, single buffered']
    #allocation10 [shape = 's32[1]{0}', space=sflag, size = 0x4, scoped, tag = 'scoped memory for tpu_custom_call.1']
    #allocation11 [shape = 'u8[16384]{0}', space=vmem, size = 0x4000, scoped, tag = 'input window, operand 15, single buffered']
    #allocation12 [shape = 'u8[65536]{0}', space=vmem, size = 0x10000, scoped, tag = 'input window, operand 16, single buffered']
    #allocation13 [shape = 's32[1]{0}', space=sflag, size = 0x4, scoped, tag = 'scoped memory for tpu_custom_call.1']
    #allocation14 [shape = 'u8[262144]{0}', space=vmem, size = 0x40000, scoped, tag = 'input window, operand 17, single buffered']
    #allocation15 [shape = 'u8[4096]{0}', space=vmem, size = 0x1000, scoped, tag = 'output window, operand 0, single buffered']
    %25 = vsyncpa [#allocation4], 0
    %26 = vsyncpa [#allocation7], 0
    %27 = vsyncpa [#allocation10], 0
    %28 = vsyncpa [#allocation13], 0
    %29 = vsyncpa [#allocation5], 0
    // Predicated region
    $region2: #{tpu_custom_call.1} parent=1 // pred_check
      _
    $region3: #{tpu_custom_call.1} parent=1 // pred_check_branch
      %31 = sbr.rel (0) target = $region5
    $region4: #{tpu_custom_call.1} parent=1 // pred_region
      %s33 = ssub.s32 1024, 1024
      %34 = vsyncadd [#allocation4], %s33
      %s35 = sshll.u32 [#allocation3], 4
      %s36 = int_to_ptr.vmem [resolvable:$true] %s35
      %41 = dma.hbm_to_vmem [thread:$0]  %s0, 1024, %s36, [#allocation4], 128, 128, 8
    $region5: #{tpu_custom_call.1} parent=1 // pred_fallthru
      _
    // Predicated region
    $region6: #{tpu_custom_call.1} parent=1 // pred_check
      _
    $region7: #{tpu_custom_call.1} parent=1 // pred_check_branch
      %43 = sbr.rel (0) target = $region9
    $region8: #{tpu_custom_call.1} parent=1 // pred_region
      %s45 = ssub.s32 512, 512
      %46 = vsyncadd [#allocation7], %s45
      %s47 = sshll.u32 [#allocation6], 4
      %s48 = int_to_ptr.vmem [resolvable:$true] %s47
      %53 = dma.hbm_to_vmem [thread:$0]  %s1, 512, %s48, [#allocation7], 128, 128, 8
    $region9: #{tpu_custom_call.1} parent=1 // pred_fallthru
      _
    // Predicated region
    $region10: #{tpu_custom_call.1} parent=1 // pred_check
      _
    $region11: #{tpu_custom_call.1} parent=1 // pred_check_branch
      %55 = sbr.rel (0) target = $region13
    $region12: #{tpu_custom_call.1} parent=1 // pred_region
      _
    $region13: #{tpu_custom_call.1} parent=1 // pred_fallthru
      _
    // Predicated region
    $region14: #{tpu_custom_call.1} parent=1 // pred_check
      _
    $region15: #{tpu_custom_call.1} parent=1 // pred_check_branch
      %57 = sbr.rel (0) target = $region17
    $region16: #{tpu_custom_call.1} parent=1 // pred_region
      _
    $region17: #{tpu_custom_call.1} parent=1 // pred_fallthru
      _
    // Predicated region
    $region18: #{tpu_custom_call.1} parent=1 // pred_check
      _
    $region19: #{tpu_custom_call.1} parent=1 // pred_check_branch
      %59 = sbr.rel (0) target = $region21
    $region20: #{tpu_custom_call.1} parent=1 // pred_region
      _
    $region21: #{tpu_custom_call.1} parent=1 // pred_fallthru
      _
    // Predicated region
    $region22: #{tpu_custom_call.1} parent=1 // pred_check
      _
    $region23: #{tpu_custom_call.1} parent=1 // pred_check_branch
      %61 = sbr.rel (0) target = $region25
    $region24: #{tpu_custom_call.1} parent=1 // pred_region
      %s63 = ssub.s32 512, 512
      %64 = vsyncadd [#allocation7], %s63
      %s65 = sshll.u32 [#allocation8], 4
      %s66 = int_to_ptr.vmem [resolvable:$true] %s65
      %71 = dma.hbm_to_vmem [thread:$0]  %s5, 512, %s66, [#allocation7], 128, 128, 8
    $region25: #{tpu_custom_call.1} parent=1 // pred_fallthru
      _
    // Predicated region
    $region26: #{tpu_custom_call.1} parent=1 // pred_check
      _
    $region27: #{tpu_custom_call.1} parent=1 // pred_check_branch
      %73 = sbr.rel (0) target = $region29
    $region28: #{tpu_custom_call.1} parent=1 // pred_region
      _
    $region29: #{tpu_custom_call.1} parent=1 // pred_fallthru
      _
    // Predicated region
    $region30: #{tpu_custom_call.1} parent=1 // pred_check
      _
    $region31: #{tpu_custom_call.1} parent=1 // pred_check_branch
      %75 = sbr.rel (0) target = $region33
    $region32: #{tpu_custom_call.1} parent=1 // pred_region
      %s77 = ssub.s32 512, 512
      %78 = vsyncadd [#allocation10], %s77
      %s79 = sshll.u32 [#allocation9], 4
      %s80 = int_to_ptr.vmem [resolvable:$true] %s79
      %85 = dma.hbm_to_vmem [thread:$0]  %s7, 512, %s80, [#allocation10], 128, 128, 8
    $region33: #{tpu_custom_call.1} parent=1 // pred_fallthru
      _
    // Predicated region
    $region34: #{tpu_custom_call.1} parent=1 // pred_check
      _
    $region35: #{tpu_custom_call.1} parent=1 // pred_check_branch
      %87 = sbr.rel (0) target = $region37
    $region36: #{tpu_custom_call.1} parent=1 // pred_region
      _
    $region37: #{tpu_custom_call.1} parent=1 // pred_fallthru
      _
    // Predicated region
    $region38: #{tpu_custom_call.1} parent=1 // pred_check
      _
    $region39: #{tpu_custom_call.1} parent=1 // pred_check_branch
      %89 = sbr.rel (0) target = $region41
    $region40: #{tpu_custom_call.1} parent=1 // pred_region
      _
    $region41: #{tpu_custom_call.1} parent=1 // pred_fallthru
      _
    // Predicated region
    $region42: #{tpu_custom_call.1} parent=1 // pred_check
      _
    $region43: #{tpu_custom_call.1} parent=1 // pred_check_branch
      %91 = sbr.rel (0) target = $region45
    $region44: #{tpu_custom_call.1} parent=1 // pred_region
      _
    $region45: #{tpu_custom_call.1} parent=1 // pred_fallthru
      _
    // Predicated region
    $region46: #{tpu_custom_call.1} parent=1 // pred_check
      _
    $region47: #{tpu_custom_call.1} parent=1 // pred_check_branch
      %93 = sbr.rel (0) target = $region49
    $region48: #{tpu_custom_call.1} parent=1 // pred_region
      _
    $region49: #{tpu_custom_call.1} parent=1 // pred_fallthru
      _
    // Predicated region
    $region50: #{tpu_custom_call.1} parent=1 // pred_check
      _
    $region51: #{tpu_custom_call.1} parent=1 // pred_check_branch
      %95 = sbr.rel (0) target = $region53
    $region52: #{tpu_custom_call.1} parent=1 // pred_region
      _
    $region53: #{tpu_custom_call.1} parent=1 // pred_fallthru
      _
    // Predicated region
    $region54: #{tpu_custom_call.1} parent=1 // pred_check
      _
    $region55: #{tpu_custom_call.1} parent=1 // pred_check_branch
      %97 = sbr.rel (0) target = $region57
    $region56: #{tpu_custom_call.1} parent=1 // pred_region
      _
    $region57: #{tpu_custom_call.1} parent=1 // pred_fallthru
      _
    // Predicated region
    $region58: #{tpu_custom_call.1} parent=1 // pred_check
      _
    $region59: #{tpu_custom_call.1} parent=1 // pred_check_branch
      %99 = sbr.rel (0) target = $region61
    $region60: #{tpu_custom_call.1} parent=1 // pred_region
      _
    $region61: #{tpu_custom_call.1} parent=1 // pred_fallthru
      _
    // Predicated region
    $region62: #{tpu_custom_call.1} parent=1 // pred_check
      _
    $region63: #{tpu_custom_call.1} parent=1 // pred_check_branch
      %101 = sbr.rel (0) target = $region65
    $region64: #{tpu_custom_call.1} parent=1 // pred_region
      %s103 = ssub.s32 512, 512
      %104 = vsyncadd [#allocation10], %s103
      %s105 = sshll.u32 [#allocation11], 4
      %s106 = int_to_ptr.vmem [resolvable:$true] %s105
      %111 = dma.hbm_to_vmem [thread:$0]  %s15, 512, %s106, [#allocation10], 128, 128, 8
    $region65: #{tpu_custom_call.1} parent=1 // pred_fallthru
      _
    // Predicated region
    $region66: #{tpu_custom_call.1} parent=1 // pred_check
      _
    $region67: #{tpu_custom_call.1} parent=1 // pred_check_branch
      %113 = sbr.rel (0) target = $region69
    $region68: #{tpu_custom_call.1} parent=1 // pred_region
      %s115 = ssub.s32 2048, 2048
      %116 = vsyncadd [#allocation13], %s115
      %s117 = sshll.u32 [#allocation12], 4
      %s118 = int_to_ptr.vmem [resolvable:$true] %s117
      %123 = dma.hbm_to_vmem [thread:$0]  %s16, 2048, %s118, [#allocation13], 256, 256, 16
    $region69: #{tpu_custom_call.1} parent=1 // pred_fallthru
      _
    // Predicated region
    $region70: #{tpu_custom_call.1} parent=1 // pred_check
      _
    $region71: #{tpu_custom_call.1} parent=1 // pred_check_branch
      %125 = sbr.rel (0) target = $region73
    $region72: #{tpu_custom_call.1} parent=1 // pred_region
      %s127 = ssub.s32 8192, 8192
      %128 = vsyncadd [#allocation13], %s127
      %s129 = sshll.u32 [#allocation14], 4
      %s130 = int_to_ptr.vmem [resolvable:$true] %s129
      %135 = dma.hbm_to_vmem [thread:$0]  %s17, 8192, %s130, [#allocation13], 256, 256, 16
    $region73: #{tpu_custom_call.1} parent=1 // pred_fallthru
      _
    // Predicated region
    $region74: #{tpu_custom_call.1} parent=1 // pred_check
      _
    $region75: #{tpu_custom_call.1} parent=1 // pred_check_branch
      %137 = sbr.rel (0) target = $region77
    $region76: #{tpu_custom_call.1} parent=1 // pred_region
      %138 = dma.done [#allocation4], 1024
    $region77: #{tpu_custom_call.1} parent=1 // pred_fallthru
      _
    // Predicated region
    $region78: #{tpu_custom_call.1} parent=1 // pred_check
      _
    $region79: #{tpu_custom_call.1} parent=1 // pred_check_branch
      %140 = sbr.rel (0) target = $region81
    $region80: #{tpu_custom_call.1} parent=1 // pred_region
      %141 = dma.done [#allocation7], 512
    $region81: #{tpu_custom_call.1} parent=1 // pred_fallthru
      _
    // Predicated region
    $region82: #{tpu_custom_call.1} parent=1 // pred_check
      _
    $region83: #{tpu_custom_call.1} parent=1 // pred_check_branch
      %143 = sbr.rel (0) target = $region85
    $region84: #{tpu_custom_call.1} parent=1 // pred_region
      %144 = dma.done [#allocation7], 512
    $region85: #{tpu_custom_call.1} parent=1 // pred_fallthru
      _
    // Predicated region
    $region86: #{tpu_custom_call.1} parent=1 // pred_check
      _
    $region87: #{tpu_custom_call.1} parent=1 // pred_check_branch
      %146 = sbr.rel (0) target = $region89
    $region88: #{tpu_custom_call.1} parent=1 // pred_region
      %147 = dma.done [#allocation10], 512
    $region89: #{tpu_custom_call.1} parent=1 // pred_fallthru
      _
    // Predicated region
    $region90: #{tpu_custom_call.1} parent=1 // pred_check
      _
    $region91: #{tpu_custom_call.1} parent=1 // pred_check_branch
      %149 = sbr.rel (0) target = $region93
    $region92: #{tpu_custom_call.1} parent=1 // pred_region
      %150 = dma.done [#allocation10], 512
    $region93: #{tpu_custom_call.1} parent=1 // pred_fallthru
      _
    // Predicated region
    $region94: #{tpu_custom_call.1} parent=1 // pred_check
      _
    $region95: #{tpu_custom_call.1} parent=1 // pred_check_branch
      %152 = sbr.rel (0) target = $region97
    $region96: #{tpu_custom_call.1} parent=1 // pred_region
      %153 = dma.done [#allocation13], 2048
    $region97: #{tpu_custom_call.1} parent=1 // pred_fallthru
      _
    // Predicated region
    $region98: #{tpu_custom_call.1} parent=1 // pred_check
      _
    $region99: #{tpu_custom_call.1} parent=1 // pred_check_branch
      %155 = sbr.rel (0) target = $region101
    $region100: #{tpu_custom_call.1} parent=1 // pred_region
      %156 = dma.done [#allocation13], 8192
    $region101: #{tpu_custom_call.1} parent=1 // pred_fallthru
      _
    %v157 = vld [vmem:[#allocation3] sm:$0xff]
    %v158 = vld [vmem:[#allocation3 + $0x8] sm:$0xff]
    %v159 = vld [vmem:[#allocation3 + $0x10] sm:$0xff]
    %v160 = vld [vmem:[#allocation3 + $0x18] sm:$0xff]
    %v161 = vld [vmem:[#allocation3 + $0x20] sm:$0xff]
    %v162 = vld [vmem:[#allocation3 + $0x28] sm:$0xff]
    %v163 = vld [vmem:[#allocation3 + $0x30] sm:$0xff]
    %v164 = vld [vmem:[#allocation3 + $0x38] sm:$0xff]
    %v165 = vld [vmem:[#allocation6] sm:$0xff]
    %v166 = vld [vmem:[#allocation6 + $0x8] sm:$0xff]
    %v167 = vld [vmem:[#allocation6 + $0x10] sm:$0xff]
    %v168 = vld [vmem:[#allocation6 + $0x18] sm:$0xff]
    %v169 = vld [vmem:[%s2] sm:$0x1]
    %v171 = vlaneseq
    %v172 = vshrl.u32 %v171, 7
    %v173 = vsub.s32 0, %v172
    %v174 = vrot.slane %v169, %v173
    %vm176 = vcmask 261120
    %v178 = vsel %vm176, %v157, 0
    %v181 = vsel %vm176, %v158, 0
    %v184 = vsel %vm176, %v159, 0
    %v187 = vsel %vm176, %v160, 0
    %v190 = vsel %vm176, %v161, 0
    %v193 = vsel %vm176, %v162, 0
    %v196 = vsel %vm176, %v163, 0
    %v199 = vsel %vm176, %v164, 0
    %201 = vmatprep.subr.mxu0 0.0
    %202 = vmatpush1.msra.mxu0 %v165
    %203 = vmatprep.subr.mxu0 0.0
    %204 = vmatpush1.msra.mxu0 %v166
    %205 = vmatprep.subr.mxu0 0.0
    %206 = vmatpush1.msra.mxu0 %v167
    %207 = vmatprep.subr.mxu0 0.0
    %208 = vmatpush1.msra.mxu0 %v168
    %209 = vmatprep.subr.mxu0 0.0
    %210 = vmatpush1.msra.mxu0 0.0
    %211 = vmatprep.subr.mxu0 0.0
    %212 = vmatpush1.msra.mxu0 0.0
    %213 = vmatprep.subr.mxu0 0.0
    %214 = vmatpush1.msra.mxu0 0.0
    %215 = vmatprep.subr.mxu0 0.0
    %216 = vmatpush1.msra.mxu0 0.0
    %217 = vmatprep.subr.mxu0 0.0
    %218 = vmatpush1.msra.mxu0 0.0
    %219 = vmatprep.subr.mxu0 0.0
    %220 = vmatpush1.msra.mxu0 0.0
    %221 = vmatprep.subr.mxu0 0.0
    %222 = vmatpush1.msra.mxu0 0.0
    %223 = vmatprep.subr.mxu0 0.0
    %224 = vmatpush1.msra.mxu0 0.0
    %225 = vmatprep.subr.mxu0 0.0
    %226 = vmatpush1.msra.mxu0 0.0
    %227 = vmatprep.subr.mxu0 0.0
    %228 = vmatpush1.msra.mxu0 0.0
    %229 = vmatprep.subr.mxu0 0.0
    %230 = vmatpush1.msra.mxu0 0.0
    %231 = vmatprep.subr.mxu0 0.0
    %232 = vmatpush1.msra.mxu0 0.0
    %233 = vmatprep.subr.mxu0 0.0
    %234 = vmatpush1.msra.mxu0 0.0
    %235 = vmatprep.subr.mxu0 0.0
    %236 = vmatpush1.msra.mxu0 0.0
    %237 = vmatprep.subr.mxu0 0.0
    %238 = vmatpush1.msra.mxu0 0.0
    %239 = vmatprep.subr.mxu0 0.0
    %240 = vmatpush1.msra.mxu0 0.0
    %241 = vmatprep.subr.mxu0 0.0
    %242 = vmatpush1.msra.mxu0 0.0
    %243 = vmatprep.subr.mxu0 0.0
    %244 = vmatpush1.msra.mxu0 0.0
    %245 = vmatprep.subr.mxu0 0.0
    %246 = vmatpush1.msra.mxu0 0.0
    %247 = vmatprep.subr.mxu0 0.0
    %248 = vmatpush1.msra.mxu0 0.0
    %249 = vmatprep.subr.mxu0 0.0
    %250 = vmatpush1.msra.mxu0 0.0
    %251 = vmatprep.subr.mxu0 0.0
    %252 = vmatpush1.msra.mxu0 0.0
    %253 = vmatprep.subr.mxu0 0.0
    %254 = vmatpush1.msra.mxu0 0.0
    %255 = vmatprep.subr.mxu0 0.0
    %256 = vmatpush1.msra.mxu0 0.0
    %257 = vmatprep.subr.mxu0 0.0
    %258 = vmatpush1.msra.mxu0 0.0
    %259 = vmatprep.subr.mxu0 0.0
    %260 = vmatpush1.msra.mxu0 0.0
    %261 = vmatprep.subr.mxu0 0.0
    %262 = vmatpush1.msra.mxu0 0.0
    %263 = vmatprep.subr.mxu0 0.0
    %264 = vmatpush1.msra.mxu0 0.0
    %265 = vmatprep.mubr.f32.mxu0 0.0
    %266 = vmatmul.mubr.f32.gmra.mrb[0].mxu0 %v178
    %v267 = vpop.f32.mrb[0].mxu0
    %v268 = vadd.f32 %v174, %v267
    %v269 = vpop.f32.mrb[0].mxu0
    %270 = vmatprep.mubr.f32.mxu0 0.0
    %271 = vmatmul.mubr.f32.gmra.mrb[0].mxu0 %v181
    %v272 = vpop.f32.mrb[0].mxu0
    %v273 = vadd.f32 %v174, %v272
    %v274 = vpop.f32.mrb[0].mxu0
    %275 = vmatprep.mubr.f32.mxu0 0.0
    %276 = vmatmul.mubr.f32.gmra.mrb[0].mxu0 %v184
    %v277 = vpop.f32.mrb[0].mxu0
    %v278 = vadd.f32 %v174, %v277
    %v279 = vpop.f32.mrb[0].mxu0
    %280 = vmatprep.mubr.f32.mxu0 0.0
    %281 = vmatmul.mubr.f32.gmra.mrb[0].mxu0 %v187
    %v282 = vpop.f32.mrb[0].mxu0
    %v283 = vadd.f32 %v174, %v282
    %v284 = vpop.f32.mrb[0].mxu0
    %285 = vmatprep.mubr.f32.mxu0 0.0
    %286 = vmatmul.mubr.f32.gmra.mrb[0].mxu0 %v190
    %v287 = vpop.f32.mrb[0].mxu0
    %v288 = vadd.f32 %v174, %v287
    %v289 = vpop.f32.mrb[0].mxu0
    %290 = vmatprep.mubr.f32.mxu0 0.0
    %291 = vmatmul.mubr.f32.gmra.mrb[0].mxu0 %v193
    %v292 = vpop.f32.mrb[0].mxu0
    %v293 = vadd.f32 %v174, %v292
    %v294 = vpop.f32.mrb[0].mxu0
    %295 = vmatprep.mubr.f32.mxu0 0.0
    %296 = vmatmul.mubr.f32.gmra.mrb[0].mxu0 %v196
    %v297 = vpop.f32.mrb[0].mxu0
    %v298 = vadd.f32 %v174, %v297
    %v299 = vpop.f32.mrb[0].mxu0
    %300 = vmatprep.mubr.f32.mxu0 0.0
    %301 = vmatmul.mubr.f32.gmra.mrb[0].mxu0 %v199
    %v302 = vpop.f32.mrb[0].mxu0
    %v303 = vadd.f32 %v174, %v302
    %v304 = vpop.f32.mrb[0].mxu0
    %305 = vdwg.mxu0
    %v306 = vld [vmem:[%s3] sm:$0x1]
    %v307 = vld [vmem:[%s4] sm:$0x1]
    %v308 = vsel %vm176, %v268, 0.0
    %309 = vadd.xlane.f32.xlu0 %v308
    %v310 = vpop.xlane.xlu0 %309
    %v311 = vsel %vm176, %v273, 0.0
    %312 = vadd.xlane.f32.xlu0 %v311
    %v313 = vpop.xlane.xlu0 %312
    %v314 = vsel %vm176, %v278, 0.0
    %315 = vadd.xlane.f32.xlu0 %v314
    %v316 = vpop.xlane.xlu0 %315
    %v317 = vsel %vm176, %v283, 0.0
    %318 = vadd.xlane.f32.xlu0 %v317
    %v319 = vpop.xlane.xlu0 %318
    %v320 = vsel %vm176, %v288, 0.0
    %321 = vadd.xlane.f32.xlu0 %v320
    %v322 = vpop.xlane.xlu0 %321
    %v323 = vsel %vm176, %v293, 0.0
    %324 = vadd.xlane.f32.xlu0 %v323
    %v325 = vpop.xlane.xlu0 %324
    %v326 = vsel %vm176, %v298, 0.0
    %327 = vadd.xlane.f32.xlu0 %v326
    %v328 = vpop.xlane.xlu0 %327
    %v329 = vsel %vm176, %v303, 0.0
    %330 = vadd.xlane.f32.xlu0 %v329
    %v331 = vpop.xlane.xlu0 %330
    %v332 = vrcp.pop 32.0
    %v333 = vmul.f32 %v310, %v332
    %v334 = vmul.f32 %v313, %v332
    %v335 = vmul.f32 %v316, %v332
    %v336 = vmul.f32 %v319, %v332
    %v337 = vmul.f32 %v322, %v332
    %v338 = vmul.f32 %v325, %v332
    %v339 = vmul.f32 %v328, %v332
    %v340 = vmul.f32 %v331, %v332
    %v341 = vsub.f32 %v268, %v333
    %v342 = vsub.f32 %v273, %v334
    %v343 = vsub.f32 %v278, %v335
    %v344 = vsub.f32 %v283, %v336
    %v345 = vsub.f32 %v288, %v337
    %v346 = vsub.f32 %v293, %v338
    %v347 = vsub.f32 %v298, %v339
    %v348 = vsub.f32 %v303, %v340
    %v349 = vmul.f32 %v341, %v341
    %v350 = vmul.f32 %v342, %v342
    %v351 = vmul.f32 %v343, %v343
    %v352 = vmul.f32 %v344, %v344
    %v353 = vmul.f32 %v345, %v345
    %v354 = vmul.f32 %v346, %v346
    %v355 = vmul.f32 %v347, %v347
    %v356 = vmul.f32 %v348, %v348
    %v357 = vsel %vm176, %v349, 0.0
    %358 = vadd.xlane.f32.xlu0 %v357
    %v359 = vpop.xlane.xlu0 %358
    %v360 = vsel %vm176, %v350, 0.0
    %361 = vadd.xlane.f32.xlu0 %v360
    %v362 = vpop.xlane.xlu0 %361
    %v363 = vsel %vm176, %v351, 0.0
    %364 = vadd.xlane.f32.xlu0 %v363
    %v365 = vpop.xlane.xlu0 %364
    %v366 = vsel %vm176, %v352, 0.0
    %367 = vadd.xlane.f32.xlu0 %v366
    %v368 = vpop.xlane.xlu0 %367
    %v369 = vsel %vm176, %v353, 0.0
    %370 = vadd.xlane.f32.xlu0 %v369
    %v371 = vpop.xlane.xlu0 %370
    %v372 = vsel %vm176, %v354, 0.0
    %373 = vadd.xlane.f32.xlu0 %v372
    %v374 = vpop.xlane.xlu0 %373
    %v375 = vsel %vm176, %v355, 0.0
    %376 = vadd.xlane.f32.xlu0 %v375
    %v377 = vpop.xlane.xlu0 %376
    %v378 = vsel %vm176, %v356, 0.0
    %379 = vadd.xlane.f32.xlu0 %v378
    %v380 = vpop.xlane.xlu0 %379
    %v381 = vmul.f32 %v359, %v332
    %v382 = vmul.f32 %v362, %v332
    %v383 = vmul.f32 %v365, %v332
    %v384 = vmul.f32 %v368, %v332
    %v385 = vmul.f32 %v371, %v332
    %v386 = vmul.f32 %v374, %v332
    %v387 = vmul.f32 %v377, %v332
    %v388 = vmul.f32 %v380, %v332
    %v389 = vadd.f32 %v381, 1e-05
    %v390 = vadd.f32 %v382, 1e-05
    %v391 = vadd.f32 %v383, 1e-05
    %v392 = vadd.f32 %v384, 1e-05
    %v393 = vadd.f32 %v385, 1e-05
    %v394 = vadd.f32 %v386, 1e-05
    %v395 = vadd.f32 %v387, 1e-05
    %v396 = vadd.f32 %v388, 1e-05
    %v397 = vrsqrt.pop %v389
    %v398 = vrsqrt.pop %v390
    %v399 = vrsqrt.pop %v391
    %v400 = vrsqrt.pop %v392
    %v401 = vrsqrt.pop %v393
    %v402 = vrsqrt.pop %v394
    %v403 = vrsqrt.pop %v395
    %v404 = vrsqrt.pop %v396
    %v405 = vmul.f32 %v341, %v397
    %v406 = vmul.f32 %v342, %v398
    %v407 = vmul.f32 %v343, %v399
    %v408 = vmul.f32 %v344, %v400
    %v409 = vmul.f32 %v345, %v401
    %v410 = vmul.f32 %v346, %v402
    %v411 = vmul.f32 %v347, %v403
    %v412 = vmul.f32 %v348, %v404
    %v414 = vlaneseq
    %v415 = vshrl.u32 %v414, 7
    %v416 = vsub.s32 0, %v415
    %v417 = vrot.slane %v306, %v416
    %v419 = vmul.f32 %v405, %v417
    %v420 = vmul.f32 %v406, %v417
    %v421 = vmul.f32 %v407, %v417
    %v422 = vmul.f32 %v408, %v417
    %v423 = vmul.f32 %v409, %v417
    %v424 = vmul.f32 %v410, %v417
    %v425 = vmul.f32 %v411, %v417
    %v426 = vmul.f32 %v412, %v417
    %v428 = vlaneseq
    %v429 = vshrl.u32 %v428, 7
    %v430 = vsub.s32 0, %v429
    %v431 = vrot.slane %v307, %v430
    %v433 = vadd.f32 %v419, %v431
    %v434 = vadd.f32 %v420, %v431
    %v435 = vadd.f32 %v421, %v431
    %v436 = vadd.f32 %v422, %v431
    %v437 = vadd.f32 %v423, %v431
    %v438 = vadd.f32 %v424, %v431
    %v439 = vadd.f32 %v425, %v431
    %v440 = vadd.f32 %v426, %v431
    %v441 = vmax.f32 %v433, 0.0
    %v442 = vmax.f32 %v434, 0.0
    %v443 = vmax.f32 %v435, 0.0
    %v444 = vmax.f32 %v436, 0.0
    %v445 = vmax.f32 %v437, 0.0
    %v446 = vmax.f32 %v438, 0.0
    %v447 = vmax.f32 %v439, 0.0
    %v448 = vmax.f32 %v440, 0.0
    %v449 = vld [vmem:[#allocation8] sm:$0xff]
    %v450 = vld [vmem:[#allocation8 + $0x8] sm:$0xff]
    %v451 = vld [vmem:[#allocation8 + $0x10] sm:$0xff]
    %v452 = vld [vmem:[#allocation8 + $0x18] sm:$0xff]
    %v453 = vld [vmem:[%s6] sm:$0x1]
    %v455 = vlaneseq
    %v456 = vshrl.u32 %v455, 7
    %v457 = vsub.s32 0, %v456
    %v458 = vrot.slane %v453, %v457
    %v461 = vsel %vm176, %v441, 0
    %v464 = vsel %vm176, %v442, 0
    %v467 = vsel %vm176, %v443, 0
    %v470 = vsel %vm176, %v444, 0
    %v473 = vsel %vm176, %v445, 0
    %v476 = vsel %vm176, %v446, 0
    %v479 = vsel %vm176, %v447, 0
    %v482 = vsel %vm176, %v448, 0
    %484 = vmatprep.subr.mxu0 0.0
    %485 = vmatpush1.msra.mxu0 %v449
    %486 = vmatprep.subr.mxu0 0.0
    %487 = vmatpush1.msra.mxu0 %v450
    %488 = vmatprep.subr.mxu0 0.0
    %489 = vmatpush1.msra.mxu0 %v451
    %490 = vmatprep.subr.mxu0 0.0
    %491 = vmatpush1.msra.mxu0 %v452
    %492 = vmatprep.subr.mxu0 0.0
    %493 = vmatpush1.msra.mxu0 0.0
    %494 = vmatprep.subr.mxu0 0.0
    %495 = vmatpush1.msra.mxu0 0.0
    %496 = vmatprep.subr.mxu0 0.0
    %497 = vmatpush1.msra.mxu0 0.0
    %498 = vmatprep.subr.mxu0 0.0
    %499 = vmatpush1.msra.mxu0 0.0
    %500 = vmatprep.subr.mxu0 0.0
    %501 = vmatpush1.msra.mxu0 0.0
    %502 = vmatprep.subr.mxu0 0.0
    %503 = vmatpush1.msra.mxu0 0.0
    %504 = vmatprep.subr.mxu0 0.0
    %505 = vmatpush1.msra.mxu0 0.0
    %506 = vmatprep.subr.mxu0 0.0
    %507 = vmatpush1.msra.mxu0 0.0
    %508 = vmatprep.subr.mxu0 0.0
    %509 = vmatpush1.msra.mxu0 0.0
    %510 = vmatprep.subr.mxu0 0.0
    %511 = vmatpush1.msra.mxu0 0.0
    %512 = vmatprep.subr.mxu0 0.0
    %513 = vmatpush1.msra.mxu0 0.0
    %514 = vmatprep.subr.mxu0 0.0
    %515 = vmatpush1.msra.mxu0 0.0
    %516 = vmatprep.subr.mxu0 0.0
    %517 = vmatpush1.msra.mxu0 0.0
    %518 = vmatprep.subr.mxu0 0.0
    %519 = vmatpush1.msra.mxu0 0.0
    %520 = vmatprep.subr.mxu0 0.0
    %521 = vmatpush1.msra.mxu0 0.0
    %522 = vmatprep.subr.mxu0 0.0
    %523 = vmatpush1.msra.mxu0 0.0
    %524 = vmatprep.subr.mxu0 0.0
    %525 = vmatpush1.msra.mxu0 0.0
    %526 = vmatprep.subr.mxu0 0.0
    %527 = vmatpush1.msra.mxu0 0.0
    %528 = vmatprep.subr.mxu0 0.0
    %529 = vmatpush1.msra.mxu0 0.0
    %530 = vmatprep.subr.mxu0 0.0
    %531 = vmatpush1.msra.mxu0 0.0
    %532 = vmatprep.subr.mxu0 0.0
    %533 = vmatpush1.msra.mxu0 0.0
    %534 = vmatprep.subr.mxu0 0.0
    %535 = vmatpush1.msra.mxu0 0.0
    %536 = vmatprep.subr.mxu0 0.0
    %537 = vmatpush1.msra.mxu0 0.0
    %538 = vmatprep.subr.mxu0 0.0
    %539 = vmatpush1.msra.mxu0 0.0
    %540 = vmatprep.subr.mxu0 0.0
    %541 = vmatpush1.msra.mxu0 0.0
    %542 = vmatprep.subr.mxu0 0.0
    %543 = vmatpush1.msra.mxu0 0.0
    %544 = vmatprep.subr.mxu0 0.0
    %545 = vmatpush1.msra.mxu0 0.0
    %546 = vmatprep.subr.mxu0 0.0
    %547 = vmatpush1.msra.mxu0 0.0
    %548 = vmatprep.mubr.f32.mxu0 0.0
    %549 = vmatmul.mubr.f32.gmra.mrb[0].mxu0 %v461
    %v550 = vpop.f32.mrb[0].mxu0
    %v551 = vadd.f32 %v458, %v550
    %v552 = vpop.f32.mrb[0].mxu0
    %553 = vmatprep.mubr.f32.mxu0 0.0
    %554 = vmatmul.mubr.f32.gmra.mrb[0].mxu0 %v464
    %v555 = vpop.f32.mrb[0].mxu0
    %v556 = vadd.f32 %v458, %v555
    %v557 = vpop.f32.mrb[0].mxu0
    %558 = vmatprep.mubr.f32.mxu0 0.0
    %559 = vmatmul.mubr.f32.gmra.mrb[0].mxu0 %v467
    %v560 = vpop.f32.mrb[0].mxu0
    %v561 = vadd.f32 %v458, %v560
    %v562 = vpop.f32.mrb[0].mxu0
    %563 = vmatprep.mubr.f32.mxu0 0.0
    %564 = vmatmul.mubr.f32.gmra.mrb[0].mxu0 %v470
    %v565 = vpop.f32.mrb[0].mxu0
    %v566 = vadd.f32 %v458, %v565
    %v567 = vpop.f32.mrb[0].mxu0
    %568 = vmatprep.mubr.f32.mxu0 0.0
    %569 = vmatmul.mubr.f32.gmra.mrb[0].mxu0 %v473
    %v570 = vpop.f32.mrb[0].mxu0
    %v571 = vadd.f32 %v458, %v570
    %v572 = vpop.f32.mrb[0].mxu0
    %573 = vmatprep.mubr.f32.mxu0 0.0
    %574 = vmatmul.mubr.f32.gmra.mrb[0].mxu0 %v476
    %v575 = vpop.f32.mrb[0].mxu0
    %v576 = vadd.f32 %v458, %v575
    %v577 = vpop.f32.mrb[0].mxu0
    %578 = vmatprep.mubr.f32.mxu0 0.0
    %579 = vmatmul.mubr.f32.gmra.mrb[0].mxu0 %v479
    %v580 = vpop.f32.mrb[0].mxu0
    %v581 = vadd.f32 %v458, %v580
    %v582 = vpop.f32.mrb[0].mxu0
    %583 = vmatprep.mubr.f32.mxu0 0.0
    %584 = vmatmul.mubr.f32.gmra.mrb[0].mxu0 %v482
    %v585 = vpop.f32.mrb[0].mxu0
    %v586 = vadd.f32 %v458, %v585
    %v587 = vpop.f32.mrb[0].mxu0
    %588 = vdwg.mxu0
    %v589 = vld [vmem:[#allocation11] sm:$0xff]
    %v590 = vld [vmem:[#allocation11 + $0x8] sm:$0xff]
    %v591 = vld [vmem:[#allocation11 + $0x10] sm:$0xff]
    %v592 = vld [vmem:[#allocation11 + $0x18] sm:$0xff]
    %597 = vrot.lane.b32.xlu0 %v589, 32
    %v598 = vpop.permute.xlu0 %597
    %599 = vrot.lane.b32.xlu0 %v590, 32
    %v600 = vpop.permute.xlu0 %599
    %601 = vrot.lane.b32.xlu0 %v591, 32
    %v602 = vpop.permute.xlu0 %601
    %603 = vrot.lane.b32.xlu0 %v592, 32
    %v604 = vpop.permute.xlu0 %603
    %v609 = vmul.f32 %v551, %v598
    %v610 = vmul.f32 %v551, %v600
    %v611 = vmul.f32 %v551, %v602
    %v612 = vmul.f32 %v551, %v604
    %v613 = vmul.f32 %v556, %v598
    %v614 = vmul.f32 %v556, %v600
    %v615 = vmul.f32 %v556, %v602
    %v616 = vmul.f32 %v556, %v604
    %v617 = vmul.f32 %v561, %v598
    %v618 = vmul.f32 %v561, %v600
    %v619 = vmul.f32 %v561, %v602
    %v620 = vmul.f32 %v561, %v604
    %v621 = vmul.f32 %v566, %v598
    %v622 = vmul.f32 %v566, %v600
    %v623 = vmul.f32 %v566, %v602
    %v624 = vmul.f32 %v566, %v604
    %v625 = vmul.f32 %v571, %v598
    %v626 = vmul.f32 %v571, %v600
    %v627 = vmul.f32 %v571, %v602
    %v628 = vmul.f32 %v571, %v604
    %v629 = vmul.f32 %v576, %v598
    %v630 = vmul.f32 %v576, %v600
    %v631 = vmul.f32 %v576, %v602
    %v632 = vmul.f32 %v576, %v604
    %v633 = vmul.f32 %v581, %v598
    %v634 = vmul.f32 %v581, %v600
    %v635 = vmul.f32 %v581, %v602
    %v636 = vmul.f32 %v581, %v604
    %v637 = vmul.f32 %v586, %v598
    %v638 = vmul.f32 %v586, %v600
    %v639 = vmul.f32 %v586, %v602
    %v640 = vmul.f32 %v586, %v604
    %641 = vrot.lane.b32.xlu0 %v589, 64
    %v642 = vpop.permute.xlu0 %641
    %643 = vrot.lane.b32.xlu0 %v590, 64
    %v644 = vpop.permute.xlu0 %643
    %645 = vrot.lane.b32.xlu0 %v591, 64
    %v646 = vpop.permute.xlu0 %645
    %647 = vrot.lane.b32.xlu0 %v592, 64
    %v648 = vpop.permute.xlu0 %647
    %v653 = vmul.f32 %v551, %v642
    %v654 = vmul.f32 %v551, %v644
    %v655 = vmul.f32 %v551, %v646
    %v656 = vmul.f32 %v551, %v648
    %v657 = vmul.f32 %v556, %v642
    %v658 = vmul.f32 %v556, %v644
    %v659 = vmul.f32 %v556, %v646
    %v660 = vmul.f32 %v556, %v648
    %v661 = vmul.f32 %v561, %v642
    %v662 = vmul.f32 %v561, %v644
    %v663 = vmul.f32 %v561, %v646
    %v664 = vmul.f32 %v561, %v648
    %v665 = vmul.f32 %v566, %v642
    %v666 = vmul.f32 %v566, %v644
    %v667 = vmul.f32 %v566, %v646
    %v668 = vmul.f32 %v566, %v648
    %v669 = vmul.f32 %v571, %v642
    %v670 = vmul.f32 %v571, %v644
    %v671 = vmul.f32 %v571, %v646
    %v672 = vmul.f32 %v571, %v648
    %v673 = vmul.f32 %v576, %v642
    %v674 = vmul.f32 %v576, %v644
    %v675 = vmul.f32 %v576, %v646
    %v676 = vmul.f32 %v576, %v648
    %v677 = vmul.f32 %v581, %v642
    %v678 = vmul.f32 %v581, %v644
    %v679 = vmul.f32 %v581, %v646
    %v680 = vmul.f32 %v581, %v648
    %v681 = vmul.f32 %v586, %v642
    %v682 = vmul.f32 %v586, %v644
    %v683 = vmul.f32 %v586, %v646
    %v684 = vmul.f32 %v586, %v648
    %v685 = vld [vmem:[#allocation12] sm:$0xff]
    %v686 = vld [vmem:[#allocation12 + $0x8] sm:$0xff]
    %v687 = vld [vmem:[#allocation12 + $0x10] sm:$0xff]
    %v688 = vld [vmem:[#allocation12 + $0x18] sm:$0xff]
    %v689 = vld [vmem:[#allocation12 + $0x20] sm:$0xff]
    %v690 = vld [vmem:[#allocation12 + $0x28] sm:$0xff]
    %v691 = vld [vmem:[#allocation12 + $0x30] sm:$0xff]
    %v692 = vld [vmem:[#allocation12 + $0x38] sm:$0xff]
    %v693 = vld [vmem:[#allocation12 + $0x40] sm:$0xff]
    %v694 = vld [vmem:[#allocation12 + $0x48] sm:$0xff]
    %v695 = vld [vmem:[#allocation12 + $0x50] sm:$0xff]
    %v696 = vld [vmem:[#allocation12 + $0x58] sm:$0xff]
    %v697 = vld [vmem:[#allocation12 + $0x60] sm:$0xff]
    %v698 = vld [vmem:[#allocation12 + $0x68] sm:$0xff]
    %v699 = vld [vmem:[#allocation12 + $0x70] sm:$0xff]
    %v700 = vld [vmem:[#allocation12 + $0x78] sm:$0xff]
    %733 = vrot.lane.b32.xlu0 %v609, 96
    %v734 = vpop.permute.xlu0 %733
    %735 = vrot.lane.b32.xlu0 %v610, 96
    %v736 = vpop.permute.xlu0 %735
    %737 = vrot.lane.b32.xlu0 %v611, 96
    %v738 = vpop.permute.xlu0 %737
    %739 = vrot.lane.b32.xlu0 %v612, 96
    %v740 = vpop.permute.xlu0 %739
    %741 = vrot.lane.b32.xlu0 %v613, 96
    %v742 = vpop.permute.xlu0 %741
    %743 = vrot.lane.b32.xlu0 %v614, 96
    %v744 = vpop.permute.xlu0 %743
    %745 = vrot.lane.b32.xlu0 %v615, 96
    %v746 = vpop.permute.xlu0 %745
    %747 = vrot.lane.b32.xlu0 %v616, 96
    %v748 = vpop.permute.xlu0 %747
    %749 = vrot.lane.b32.xlu0 %v617, 96
    %v750 = vpop.permute.xlu0 %749
    %751 = vrot.lane.b32.xlu0 %v618, 96
    %v752 = vpop.permute.xlu0 %751
    %753 = vrot.lane.b32.xlu0 %v619, 96
    %v754 = vpop.permute.xlu0 %753
    %755 = vrot.lane.b32.xlu0 %v620, 96
    %v756 = vpop.permute.xlu0 %755
    %757 = vrot.lane.b32.xlu0 %v621, 96
    %v758 = vpop.permute.xlu0 %757
    %759 = vrot.lane.b32.xlu0 %v622, 96
    %v760 = vpop.permute.xlu0 %759
    %761 = vrot.lane.b32.xlu0 %v623, 96
    %v762 = vpop.permute.xlu0 %761
    %763 = vrot.lane.b32.xlu0 %v624, 96
    %v764 = vpop.permute.xlu0 %763
    %765 = vrot.lane.b32.xlu0 %v625, 96
    %v766 = vpop.permute.xlu0 %765
    %767 = vrot.lane.b32.xlu0 %v626, 96
    %v768 = vpop.permute.xlu0 %767
    %769 = vrot.lane.b32.xlu0 %v627, 96
    %v770 = vpop.permute.xlu0 %769
    %771 = vrot.lane.b32.xlu0 %v628, 96
    %v772 = vpop.permute.xlu0 %771
    %773 = vrot.lane.b32.xlu0 %v629, 96
    %v774 = vpop.permute.xlu0 %773
    %775 = vrot.lane.b32.xlu0 %v630, 96
    %v776 = vpop.permute.xlu0 %775
    %777 = vrot.lane.b32.xlu0 %v631, 96
    %v778 = vpop.permute.xlu0 %777
    %779 = vrot.lane.b32.xlu0 %v632, 96
    %v780 = vpop.permute.xlu0 %779
    %781 = vrot.lane.b32.xlu0 %v633, 96
    %v782 = vpop.permute.xlu0 %781
    %783 = vrot.lane.b32.xlu0 %v634, 96
    %v784 = vpop.permute.xlu0 %783
    %785 = vrot.lane.b32.xlu0 %v635, 96
    %v786 = vpop.permute.xlu0 %785
    %787 = vrot.lane.b32.xlu0 %v636, 96
    %v788 = vpop.permute.xlu0 %787
    %789 = vrot.lane.b32.xlu0 %v637, 96
    %v790 = vpop.permute.xlu0 %789
    %791 = vrot.lane.b32.xlu0 %v638, 96
    %v792 = vpop.permute.xlu0 %791
    %793 = vrot.lane.b32.xlu0 %v639, 96
    %v794 = vpop.permute.xlu0 %793
    %795 = vrot.lane.b32.xlu0 %v640, 96
    %v796 = vpop.permute.xlu0 %795
    %v798 = vsel %vm176, %v551, 0
    %v801 = vsel %vm176, %v556, 0
    %v804 = vsel %vm176, %v561, 0
    %v807 = vsel %vm176, %v566, 0
    %v810 = vsel %vm176, %v571, 0
    %v813 = vsel %vm176, %v576, 0
    %v816 = vsel %vm176, %v581, 0
    %v819 = vsel %vm176, %v586, 0
    %v821 = vsel %vm176, %v734, 0
    %v823 = vsel %vm176, %v736, 0
    %v825 = vsel %vm176, %v738, 0
    %v827 = vsel %vm176, %v740, 0
    %v829 = vsel %vm176, %v742, 0
    %v831 = vsel %vm176, %v744, 0
    %v833 = vsel %vm176, %v746, 0
    %v835 = vsel %vm176, %v748, 0
    %v837 = vsel %vm176, %v750, 0
    %v839 = vsel %vm176, %v752, 0
    %v841 = vsel %vm176, %v754, 0
    %v843 = vsel %vm176, %v756, 0
    %v845 = vsel %vm176, %v758, 0
    %v847 = vsel %vm176, %v760, 0
    %v849 = vsel %vm176, %v762, 0
    %v851 = vsel %vm176, %v764, 0
    %v853 = vsel %vm176, %v766, 0
    %v855 = vsel %vm176, %v768, 0
    %v857 = vsel %vm176, %v770, 0
    %v859 = vsel %vm176, %v772, 0
    %v861 = vsel %vm176, %v774, 0
    %v863 = vsel %vm176, %v776, 0
    %v865 = vsel %vm176, %v778, 0
    %v867 = vsel %vm176, %v780, 0
    %v869 = vsel %vm176, %v782, 0
    %v871 = vsel %vm176, %v784, 0
    %v873 = vsel %vm176, %v786, 0
    %v875 = vsel %vm176, %v788, 0
    %v877 = vsel %vm176, %v790, 0
    %v879 = vsel %vm176, %v792, 0
    %v881 = vsel %vm176, %v794, 0
    %v883 = vsel %vm176, %v796, 0
    %885 = vmatprep.subr.mxu0 0.0
    %886 = vmatpush1.xpose.msra.mxu0 %v821
    %887 = vmatprep.subr.mxu0 0.0
    %888 = vmatpush1.xpose.msra.mxu0 %v823
    %889 = vmatprep.subr.mxu0 0.0
    %890 = vmatpush1.xpose.msra.mxu0 %v825
    %891 = vmatprep.subr.mxu0 0.0
    %892 = vmatpush1.xpose.msra.mxu0 %v827
    %893 = vmatprep.subr.mxu0 0.0
    %894 = vmatpush1.xpose.msra.mxu0 %v829
    %895 = vmatprep.subr.mxu0 0.0
    %896 = vmatpush1.xpose.msra.mxu0 %v831
    %897 = vmatprep.subr.mxu0 0.0
    %898 = vmatpush1.xpose.msra.mxu0 %v833
    %899 = vmatprep.subr.mxu0 0.0
    %900 = vmatpush1.xpose.msra.mxu0 %v835
    %901 = vmatprep.subr.mxu0 0.0
    %902 = vmatpush1.xpose.msra.mxu0 %v837
    %903 = vmatprep.subr.mxu0 0.0
    %904 = vmatpush1.xpose.msra.mxu0 %v839
    %905 = vmatprep.subr.mxu0 0.0
    %906 = vmatpush1.xpose.msra.mxu0 %v841
    %907 = vmatprep.subr.mxu0 0.0
    %908 = vmatpush1.xpose.msra.mxu0 %v843
    %909 = vmatprep.subr.mxu0 0.0
    %910 = vmatpush1.xpose.msra.mxu0 %v845
    %911 = vmatprep.subr.mxu0 0.0
    %912 = vmatpush1.xpose.msra.mxu0 %v847
    %913 = vmatprep.subr.mxu0 0.0
    %914 = vmatpush1.xpose.msra.mxu0 %v849
    %915 = vmatprep.subr.mxu0 0.0
    %916 = vmatpush1.xpose.msra.mxu0 %v851
    %917 = vmatprep.subr.mxu0 0.0
    %918 = vmatpush1.xpose.msra.mxu0 %v853
    %919 = vmatprep.subr.mxu0 0.0
    %920 = vmatpush1.xpose.msra.mxu0 %v855
    %921 = vmatprep.subr.mxu0 0.0
    %922 = vmatpush1.xpose.msra.mxu0 %v857
    %923 = vmatprep.subr.mxu0 0.0
    %924 = vmatpush1.xpose.msra.mxu0 %v859
    %925 = vmatprep.subr.mxu0 0.0
    %926 = vmatpush1.xpose.msra.mxu0 %v861
    %927 = vmatprep.subr.mxu0 0.0
    %928 = vmatpush1.xpose.msra.mxu0 %v863
    %929 = vmatprep.subr.mxu0 0.0
    %930 = vmatpush1.xpose.msra.mxu0 %v865
    %931 = vmatprep.subr.mxu0 0.0
    %932 = vmatpush1.xpose.msra.mxu0 %v867
    %933 = vmatprep.subr.mxu0 0.0
    %934 = vmatpush1.xpose.msra.mxu0 %v869
    %935 = vmatprep.subr.mxu0 0.0
    %936 = vmatpush1.xpose.msra.mxu0 %v871
    %937 = vmatprep.subr.mxu0 0.0
    %938 = vmatpush1.xpose.msra.mxu0 %v873
    %939 = vmatprep.subr.mxu0 0.0
    %940 = vmatpush1.xpose.msra.mxu0 %v875
    %941 = vmatprep.subr.mxu0 0.0
    %942 = vmatpush1.xpose.msra.mxu0 %v877
    %943 = vmatprep.subr.mxu0 0.0
    %944 = vmatpush1.xpose.msra.mxu0 %v879
    %945 = vmatprep.subr.mxu0 0.0
    %946 = vmatpush1.xpose.msra.mxu0 %v881
    %947 = vmatprep.subr.mxu0 0.0
    %948 = vmatpush1.xpose.msra.mxu0 %v883
    %949 = vmatprep.mubr.f32.mxu0 0.0
    %950 = vmatmul.mubr.f32.gmra.mrb[0].mxu0 %v798
    %v951 = vpop.f32.mrb[0].mxu0
    %v952 = vadd.f32 %v685, %v951
    %v953 = vpop.f32.mrb[0].mxu0
    %v954 = vadd.f32 %v686, %v953
    %955 = vmatprep.mubr.f32.mxu0 0.0
    %956 = vmatmul.mubr.f32.gmra.mrb[0].mxu0 %v801
    %v957 = vpop.f32.mrb[0].mxu0
    %v958 = vadd.f32 %v687, %v957
    %v959 = vpop.f32.mrb[0].mxu0
    %v960 = vadd.f32 %v688, %v959
    %961 = vmatprep.mubr.f32.mxu0 0.0
    %962 = vmatmul.mubr.f32.gmra.mrb[0].mxu0 %v804
    %v963 = vpop.f32.mrb[0].mxu0
    %v964 = vadd.f32 %v689, %v963
    %v965 = vpop.f32.mrb[0].mxu0
    %v966 = vadd.f32 %v690, %v965
    %967 = vmatprep.mubr.f32.mxu0 0.0
    %968 = vmatmul.mubr.f32.gmra.mrb[0].mxu0 %v807
    %v969 = vpop.f32.mrb[0].mxu0
    %v970 = vadd.f32 %v691, %v969
    %v971 = vpop.f32.mrb[0].mxu0
    %v972 = vadd.f32 %v692, %v971
    %973 = vmatprep.mubr.f32.mxu0 0.0
    %974 = vmatmul.mubr.f32.gmra.mrb[0].mxu0 %v810
    %v975 = vpop.f32.mrb[0].mxu0
    %v976 = vadd.f32 %v693, %v975
    %v977 = vpop.f32.mrb[0].mxu0
    %v978 = vadd.f32 %v694, %v977
    %979 = vmatprep.mubr.f32.mxu0 0.0
    %980 = vmatmul.mubr.f32.gmra.mrb[0].mxu0 %v813
    %v981 = vpop.f32.mrb[0].mxu0
    %v982 = vadd.f32 %v695, %v981
    %v983 = vpop.f32.mrb[0].mxu0
    %v984 = vadd.f32 %v696, %v983
    %985 = vmatprep.mubr.f32.mxu0 0.0
    %986 = vmatmul.mubr.f32.gmra.mrb[0].mxu0 %v816
    %v987 = vpop.f32.mrb[0].mxu0
    %v988 = vadd.f32 %v697, %v987
    %v989 = vpop.f32.mrb[0].mxu0
    %v990 = vadd.f32 %v698, %v989
    %991 = vmatprep.mubr.f32.mxu0 0.0
    %992 = vmatmul.mubr.f32.gmra.mrb[0].mxu0 %v819
    %v993 = vpop.f32.mrb[0].mxu0
    %v994 = vadd.f32 %v699, %v993
    %v995 = vpop.f32.mrb[0].mxu0
    %v996 = vadd.f32 %v700, %v995
    %997 = vdwg.mxu0
    %v998 = vmax.f32 %v952, %v954
    %999 = vmax.xlane.f32.xlu0 %v998
    %v1000 = vpop.xlane.xlu0 %999
    %v1001 = vmax.f32 %v958, %v960
    %1002 = vmax.xlane.f32.xlu0 %v1001
    %v1003 = vpop.xlane.xlu0 %1002
    %v1004 = vmax.f32 %v964, %v966
    %1005 = vmax.xlane.f32.xlu0 %v1004
    %v1006 = vpop.xlane.xlu0 %1005
    %v1007 = vmax.f32 %v970, %v972
    %1008 = vmax.xlane.f32.xlu0 %v1007
    %v1009 = vpop.xlane.xlu0 %1008
    %v1010 = vmax.f32 %v976, %v978
    %1011 = vmax.xlane.f32.xlu0 %v1010
    %v1012 = vpop.xlane.xlu0 %1011
    %v1013 = vmax.f32 %v982, %v984
    %1014 = vmax.xlane.f32.xlu0 %v1013
    %v1015 = vpop.xlane.xlu0 %1014
    %v1016 = vmax.f32 %v988, %v990
    %1017 = vmax.xlane.f32.xlu0 %v1016
    %v1018 = vpop.xlane.xlu0 %1017
    %v1019 = vmax.f32 %v994, %v996
    %1020 = vmax.xlane.f32.xlu0 %v1019
    %v1021 = vpop.xlane.xlu0 %1020
    %v1022 = vsub.f32 %v952, %v1000
    %v1023 = vsub.f32 %v954, %v1000
    %v1024 = vsub.f32 %v958, %v1003
    %v1025 = vsub.f32 %v960, %v1003
    %v1026 = vsub.f32 %v964, %v1006
    %v1027 = vsub.f32 %v966, %v1006
    %v1028 = vsub.f32 %v970, %v1009
    %v1029 = vsub.f32 %v972, %v1009
    %v1030 = vsub.f32 %v976, %v1012
    %v1031 = vsub.f32 %v978, %v1012
    %v1032 = vsub.f32 %v982, %v1015
    %v1033 = vsub.f32 %v984, %v1015
    %v1034 = vsub.f32 %v988, %v1018
    %v1035 = vsub.f32 %v990, %v1018
    %v1036 = vsub.f32 %v994, %v1021
    %v1037 = vsub.f32 %v996, %v1021
    %v1038 = vmul.f32 %v1022, 1.442695
    %v1039 = vpow.pop %v1038
    %v1040 = vmul.f32 %v1023, 1.442695
    %v1041 = vpow.pop %v1040
    %v1042 = vmul.f32 %v1024, 1.442695
    %v1043 = vpow.pop %v1042
    %v1044 = vmul.f32 %v1025, 1.442695
    %v1045 = vpow.pop %v1044
    %v1046 = vmul.f32 %v1026, 1.442695
    %v1047 = vpow.pop %v1046
    %v1048 = vmul.f32 %v1027, 1.442695
    %v1049 = vpow.pop %v1048
    %v1050 = vmul.f32 %v1028, 1.442695
    %v1051 = vpow.pop %v1050
    %v1052 = vmul.f32 %v1029, 1.442695
    %v1053 = vpow.pop %v1052
    %v1054 = vmul.f32 %v1030, 1.442695
    %v1055 = vpow.pop %v1054
    %v1056 = vmul.f32 %v1031, 1.442695
    %v1057 = vpow.pop %v1056
    %v1058 = vmul.f32 %v1032, 1.442695
    %v1059 = vpow.pop %v1058
    %v1060 = vmul.f32 %v1033, 1.442695
    %v1061 = vpow.pop %v1060
    %v1062 = vmul.f32 %v1034, 1.442695
    %v1063 = vpow.pop %v1062
    %v1064 = vmul.f32 %v1035, 1.442695
    %v1065 = vpow.pop %v1064
    %v1066 = vmul.f32 %v1036, 1.442695
    %v1067 = vpow.pop %v1066
    %v1068 = vmul.f32 %v1037, 1.442695
    %v1069 = vpow.pop %v1068
    %v1070 = vld [vmem:[#allocation14] sm:$0xff]
    %v1071 = vld [vmem:[#allocation14 + $0x8] sm:$0xff]
    %v1072 = vld [vmem:[#allocation14 + $0x10] sm:$0xff]
    %v1073 = vld [vmem:[#allocation14 + $0x18] sm:$0xff]
    %v1074 = vld [vmem:[#allocation14 + $0x20] sm:$0xff]
    %v1075 = vld [vmem:[#allocation14 + $0x28] sm:$0xff]
    %v1076 = vld [vmem:[#allocation14 + $0x30] sm:$0xff]
    %v1077 = vld [vmem:[#allocation14 + $0x38] sm:$0xff]
    %v1078 = vld [vmem:[#allocation14 + $0x40] sm:$0xff]
    %v1079 = vld [vmem:[#allocation14 + $0x48] sm:$0xff]
    %v1080 = vld [vmem:[#allocation14 + $0x50] sm:$0xff]
    %v1081 = vld [vmem:[#allocation14 + $0x58] sm:$0xff]
    %v1082 = vld [vmem:[#allocation14 + $0x60] sm:$0xff]
    %v1083 = vld [vmem:[#allocation14 + $0x68] sm:$0xff]
    %v1084 = vld [vmem:[#allocation14 + $0x70] sm:$0xff]
    %v1085 = vld [vmem:[#allocation14 + $0x78] sm:$0xff]
    %v1086 = vld [vmem:[#allocation14 + $0x80] sm:$0xff]
    %v1087 = vld [vmem:[#allocation14 + $0x88] sm:$0xff]
    %v1088 = vld [vmem:[#allocation14 + $0x90] sm:$0xff]
    %v1089 = vld [vmem:[#allocation14 + $0x98] sm:$0xff]
    %v1090 = vld [vmem:[#allocation14 + $0xa0] sm:$0xff]
    %v1091 = vld [vmem:[#allocation14 + $0xa8] sm:$0xff]
    %v1092 = vld [vmem:[#allocation14 + $0xb0] sm:$0xff]
    %v1093 = vld [vmem:[#allocation14 + $0xb8] sm:$0xff]
    %v1094 = vld [vmem:[#allocation14 + $0xc0] sm:$0xff]
    %v1095 = vld [vmem:[#allocation14 + $0xc8] sm:$0xff]
    %v1096 = vld [vmem:[#allocation14 + $0xd0] sm:$0xff]
    %v1097 = vld [vmem:[#allocation14 + $0xd8] sm:$0xff]
    %v1098 = vld [vmem:[#allocation14 + $0xe0] sm:$0xff]
    %v1099 = vld [vmem:[#allocation14 + $0xe8] sm:$0xff]
    %v1100 = vld [vmem:[#allocation14 + $0xf0] sm:$0xff]
    %v1101 = vld [vmem:[#allocation14 + $0xf8] sm:$0xff]
    %v1102 = vld [vmem:[#allocation14 + $0x100] sm:$0xff]
    %v1103 = vld [vmem:[#allocation14 + $0x108] sm:$0xff]
    %v1104 = vld [vmem:[#allocation14 + $0x110] sm:$0xff]
    %v1105 = vld [vmem:[#allocation14 + $0x118] sm:$0xff]
    %v1106 = vld [vmem:[#allocation14 + $0x120] sm:$0xff]
    %v1107 = vld [vmem:[#allocation14 + $0x128] sm:$0xff]
    %v1108 = vld [vmem:[#allocation14 + $0x130] sm:$0xff]
    %v1109 = vld [vmem:[#allocation14 + $0x138] sm:$0xff]
    %v1110 = vld [vmem:[#allocation14 + $0x140] sm:$0xff]
    %v1111 = vld [vmem:[#allocation14 + $0x148] sm:$0xff]
    %v1112 = vld [vmem:[#allocation14 + $0x150] sm:$0xff]
    %v1113 = vld [vmem:[#allocation14 + $0x158] sm:$0xff]
    %v1114 = vld [vmem:[#allocation14 + $0x160] sm:$0xff]
    %v1115 = vld [vmem:[#allocation14 + $0x168] sm:$0xff]
    %v1116 = vld [vmem:[#allocation14 + $0x170] sm:$0xff]
    %v1117 = vld [vmem:[#allocation14 + $0x178] sm:$0xff]
    %v1118 = vld [vmem:[#allocation14 + $0x180] sm:$0xff]
    %v1119 = vld [vmem:[#allocation14 + $0x188] sm:$0xff]
    %v1120 = vld [vmem:[#allocation14 + $0x190] sm:$0xff]
    %v1121 = vld [vmem:[#allocation14 + $0x198] sm:$0xff]
    %v1122 = vld [vmem:[#allocation14 + $0x1a0] sm:$0xff]
    %v1123 = vld [vmem:[#allocation14 + $0x1a8] sm:$0xff]
    %v1124 = vld [vmem:[#allocation14 + $0x1b0] sm:$0xff]
    %v1125 = vld [vmem:[#allocation14 + $0x1b8] sm:$0xff]
    %v1126 = vld [vmem:[#allocation14 + $0x1c0] sm:$0xff]
    %v1127 = vld [vmem:[#allocation14 + $0x1c8] sm:$0xff]
    %v1128 = vld [vmem:[#allocation14 + $0x1d0] sm:$0xff]
    %v1129 = vld [vmem:[#allocation14 + $0x1d8] sm:$0xff]
    %v1130 = vld [vmem:[#allocation14 + $0x1e0] sm:$0xff]
    %v1131 = vld [vmem:[#allocation14 + $0x1e8] sm:$0xff]
    %v1132 = vld [vmem:[#allocation14 + $0x1f0] sm:$0xff]
    %v1133 = vld [vmem:[#allocation14 + $0x1f8] sm:$0xff]
    %1134 = vmatprep.subr.mxu0 %v1071
    %1135 = vmatpush1.msra.mxu0 %v1070
    %1136 = vmatprep.subr.mxu0 %v1073
    %1137 = vmatpush1.msra.mxu0 %v1072
    %1138 = vmatprep.subr.mxu0 %v1075
    %1139 = vmatpush1.msra.mxu0 %v1074
    %1140 = vmatprep.subr.mxu0 %v1077
    %1141 = vmatpush1.msra.mxu0 %v1076
    %1142 = vmatprep.subr.mxu0 %v1079
    %1143 = vmatpush1.msra.mxu0 %v1078
    %1144 = vmatprep.subr.mxu0 %v1081
    %1145 = vmatpush1.msra.mxu0 %v1080
    %1146 = vmatprep.subr.mxu0 %v1083
    %1147 = vmatpush1.msra.mxu0 %v1082
    %1148 = vmatprep.subr.mxu0 %v1085
    %1149 = vmatpush1.msra.mxu0 %v1084
    %1150 = vmatprep.subr.mxu0 %v1087
    %1151 = vmatpush1.msra.mxu0 %v1086
    %1152 = vmatprep.subr.mxu0 %v1089
    %1153 = vmatpush1.msra.mxu0 %v1088
    %1154 = vmatprep.subr.mxu0 %v1091
    %1155 = vmatpush1.msra.mxu0 %v1090
    %1156 = vmatprep.subr.mxu0 %v1093
    %1157 = vmatpush1.msra.mxu0 %v1092
    %1158 = vmatprep.subr.mxu0 %v1095
    %1159 = vmatpush1.msra.mxu0 %v1094
    %1160 = vmatprep.subr.mxu0 %v1097
    %1161 = vmatpush1.msra.mxu0 %v1096
    %1162 = vmatprep.subr.mxu0 %v1099
    %1163 = vmatpush1.msra.mxu0 %v1098
    %1164 = vmatprep.subr.mxu0 %v1101
    %1165 = vmatpush1.msra.mxu0 %v1100
    %1166 = vmatprep.subr.mxu0 %v1103
    %1167 = vmatpush1.msra.mxu0 %v1102
    %1168 = vmatprep.subr.mxu0 %v1105
    %1169 = vmatpush1.msra.mxu0 %v1104
    %1170 = vmatprep.subr.mxu0 %v1107
    %1171 = vmatpush1.msra.mxu0 %v1106
    %1172 = vmatprep.subr.mxu0 %v1109
    %1173 = vmatpush1.msra.mxu0 %v1108
    %1174 = vmatprep.subr.mxu0 %v1111
    %1175 = vmatpush1.msra.mxu0 %v1110
    %1176 = vmatprep.subr.mxu0 %v1113
    %1177 = vmatpush1.msra.mxu0 %v1112
    %1178 = vmatprep.subr.mxu0 %v1115
    %1179 = vmatpush1.msra.mxu0 %v1114
    %1180 = vmatprep.subr.mxu0 %v1117
    %1181 = vmatpush1.msra.mxu0 %v1116
    %1182 = vmatprep.subr.mxu0 %v1119
    %1183 = vmatpush1.msra.mxu0 %v1118
    %1184 = vmatprep.subr.mxu0 %v1121
    %1185 = vmatpush1.msra.mxu0 %v1120
    %1186 = vmatprep.subr.mxu0 %v1123
    %1187 = vmatpush1.msra.mxu0 %v1122
    %1188 = vmatprep.subr.mxu0 %v1125
    %1189 = vmatpush1.msra.mxu0 %v1124
    %1190 = vmatprep.subr.mxu0 %v1127
    %1191 = vmatpush1.msra.mxu0 %v1126
    %1192 = vmatprep.subr.mxu0 %v1129
    %1193 = vmatpush1.msra.mxu0 %v1128
    %1194 = vmatprep.subr.mxu0 %v1131
    %1195 = vmatpush1.msra.mxu0 %v1130
    %1196 = vmatprep.subr.mxu0 %v1133
    %1197 = vmatpush1.msra.mxu0 %v1132
    %1198 = vmatprep.mubr.f32.mxu0 %v1041
    %1199 = vmatmul.mubr.f32.gmra.mrb[0].mxu0 %v1039
    %v1200 = vpop.f32.mrb[0].mxu0
    %v1201 = vadd.f32 1e-30, %v1200
    %v1202 = vpop.f32.mrb[0].mxu0
    %v1203 = vadd.f32 1e-30, %v1202
    %1204 = vmatprep.mubr.f32.mxu0 %v1045
    %1205 = vmatmul.mubr.f32.gmra.mrb[0].mxu0 %v1043
    %v1206 = vpop.f32.mrb[0].mxu0
    %v1207 = vadd.f32 1e-30, %v1206
    %v1208 = vpop.f32.mrb[0].mxu0
    %v1209 = vadd.f32 1e-30, %v1208
    %1210 = vmatprep.mubr.f32.mxu0 %v1049
    %1211 = vmatmul.mubr.f32.gmra.mrb[0].mxu0 %v1047
    %v1212 = vpop.f32.mrb[0].mxu0
    %v1213 = vadd.f32 1e-30, %v1212
    %v1214 = vpop.f32.mrb[0].mxu0
    %v1215 = vadd.f32 1e-30, %v1214
    %1216 = vmatprep.mubr.f32.mxu0 %v1053
    %1217 = vmatmul.mubr.f32.gmra.mrb[0].mxu0 %v1051
    %v1218 = vpop.f32.mrb[0].mxu0
    %v1219 = vadd.f32 1e-30, %v1218
    %v1220 = vpop.f32.mrb[0].mxu0
    %v1221 = vadd.f32 1e-30, %v1220
    %1222 = vmatprep.mubr.f32.mxu0 %v1057
    %1223 = vmatmul.mubr.f32.gmra.mrb[0].mxu0 %v1055
    %v1224 = vpop.f32.mrb[0].mxu0
    %v1225 = vadd.f32 1e-30, %v1224
    %v1226 = vpop.f32.mrb[0].mxu0
    %v1227 = vadd.f32 1e-30, %v1226
    %1228 = vmatprep.mubr.f32.mxu0 %v1061
    %1229 = vmatmul.mubr.f32.gmra.mrb[0].mxu0 %v1059
    %v1230 = vpop.f32.mrb[0].mxu0
    %v1231 = vadd.f32 1e-30, %v1230
    %v1232 = vpop.f32.mrb[0].mxu0
    %v1233 = vadd.f32 1e-30, %v1232
    %1234 = vmatprep.mubr.f32.mxu0 %v1065
    %1235 = vmatmul.mubr.f32.gmra.mrb[0].mxu0 %v1063
    %v1236 = vpop.f32.mrb[0].mxu0
    %v1237 = vadd.f32 1e-30, %v1236
    %v1238 = vpop.f32.mrb[0].mxu0
    %v1239 = vadd.f32 1e-30, %v1238
    %1240 = vmatprep.mubr.f32.mxu0 %v1069
    %1241 = vmatmul.mubr.f32.gmra.mrb[0].mxu0 %v1067
    %v1242 = vpop.f32.mrb[0].mxu0
    %v1243 = vadd.f32 1e-30, %v1242
    %v1244 = vpop.f32.mrb[0].mxu0
    %v1245 = vadd.f32 1e-30, %v1244
    %1246 = vdwg.mxu0
    %v1247 = vrcp.pop %v1201
    %v1248 = vmul.f32 1.0, %v1247
    %v1249 = vrcp.pop %v1203
    %v1250 = vmul.f32 1.0, %v1249
    %v1251 = vrcp.pop %v1207
    %v1252 = vmul.f32 1.0, %v1251
    %v1253 = vrcp.pop %v1209
    %v1254 = vmul.f32 1.0, %v1253
    %v1255 = vrcp.pop %v1213
    %v1256 = vmul.f32 1.0, %v1255
    %v1257 = vrcp.pop %v1215
    %v1258 = vmul.f32 1.0, %v1257
    %v1259 = vrcp.pop %v1219
    %v1260 = vmul.f32 1.0, %v1259
    %v1261 = vrcp.pop %v1221
    %v1262 = vmul.f32 1.0, %v1261
    %v1263 = vrcp.pop %v1225
    %v1264 = vmul.f32 1.0, %v1263
    %v1265 = vrcp.pop %v1227
    %v1266 = vmul.f32 1.0, %v1265
    %v1267 = vrcp.pop %v1231
    %v1268 = vmul.f32 1.0, %v1267
    %v1269 = vrcp.pop %v1233
    %v1270 = vmul.f32 1.0, %v1269
    %v1271 = vrcp.pop %v1237
    %v1272 = vmul.f32 1.0, %v1271
    %v1273 = vrcp.pop %v1239
    %v1274 = vmul.f32 1.0, %v1273
    %v1275 = vrcp.pop %v1243
    %v1276 = vmul.f32 1.0, %v1275
    %v1277 = vrcp.pop %v1245
    %v1278 = vmul.f32 1.0, %v1277
    %v1279 = vmul.f32 %v1039, %v1248
    %v1280 = vmul.f32 %v1041, %v1250
    %v1281 = vmul.f32 %v1043, %v1252
    %v1282 = vmul.f32 %v1045, %v1254
    %v1283 = vmul.f32 %v1047, %v1256
    %v1284 = vmul.f32 %v1049, %v1258
    %v1285 = vmul.f32 %v1051, %v1260
    %v1286 = vmul.f32 %v1053, %v1262
    %v1287 = vmul.f32 %v1055, %v1264
    %v1288 = vmul.f32 %v1057, %v1266
    %v1289 = vmul.f32 %v1059, %v1268
    %v1290 = vmul.f32 %v1061, %v1270
    %v1291 = vmul.f32 %v1063, %v1272
    %v1292 = vmul.f32 %v1065, %v1274
    %v1293 = vmul.f32 %v1067, %v1276
    %v1294 = vmul.f32 %v1069, %v1278
    %1327 = vrot.lane.b32.xlu0 %v653, 64
    %v1328 = vpop.permute.xlu0 %1327
    %1329 = vrot.lane.b32.xlu0 %v654, 64
    %v1330 = vpop.permute.xlu0 %1329
    %1331 = vrot.lane.b32.xlu0 %v655, 64
    %v1332 = vpop.permute.xlu0 %1331
    %1333 = vrot.lane.b32.xlu0 %v656, 64
    %v1334 = vpop.permute.xlu0 %1333
    %1335 = vrot.lane.b32.xlu0 %v657, 64
    %v1336 = vpop.permute.xlu0 %1335
    %1337 = vrot.lane.b32.xlu0 %v658, 64
    %v1338 = vpop.permute.xlu0 %1337
    %1339 = vrot.lane.b32.xlu0 %v659, 64
    %v1340 = vpop.permute.xlu0 %1339
    %1341 = vrot.lane.b32.xlu0 %v660, 64
    %v1342 = vpop.permute.xlu0 %1341
    %1343 = vrot.lane.b32.xlu0 %v661, 64
    %v1344 = vpop.permute.xlu0 %1343
    %1345 = vrot.lane.b32.xlu0 %v662, 64
    %v1346 = vpop.permute.xlu0 %1345
    %1347 = vrot.lane.b32.xlu0 %v663, 64
    %v1348 = vpop.permute.xlu0 %1347
    %1349 = vrot.lane.b32.xlu0 %v664, 64
    %v1350 = vpop.permute.xlu0 %1349
    %1351 = vrot.lane.b32.xlu0 %v665, 64
    %v1352 = vpop.permute.xlu0 %1351
    %1353 = vrot.lane.b32.xlu0 %v666, 64
    %v1354 = vpop.permute.xlu0 %1353
    %1355 = vrot.lane.b32.xlu0 %v667, 64
    %v1356 = vpop.permute.xlu0 %1355
    %1357 = vrot.lane.b32.xlu0 %v668, 64
    %v1358 = vpop.permute.xlu0 %1357
    %1359 = vrot.lane.b32.xlu0 %v669, 64
    %v1360 = vpop.permute.xlu0 %1359
    %1361 = vrot.lane.b32.xlu0 %v670, 64
    %v1362 = vpop.permute.xlu0 %1361
    %1363 = vrot.lane.b32.xlu0 %v671, 64
    %v1364 = vpop.permute.xlu0 %1363
    %1365 = vrot.lane.b32.xlu0 %v672, 64
    %v1366 = vpop.permute.xlu0 %1365
    %1367 = vrot.lane.b32.xlu0 %v673, 64
    %v1368 = vpop.permute.xlu0 %1367
    %1369 = vrot.lane.b32.xlu0 %v674, 64
    %v1370 = vpop.permute.xlu0 %1369
    %1371 = vrot.lane.b32.xlu0 %v675, 64
    %v1372 = vpop.permute.xlu0 %1371
    %1373 = vrot.lane.b32.xlu0 %v676, 64
    %v1374 = vpop.permute.xlu0 %1373
    %1375 = vrot.lane.b32.xlu0 %v677, 64
    %v1376 = vpop.permute.xlu0 %1375
    %1377 = vrot.lane.b32.xlu0 %v678, 64
    %v1378 = vpop.permute.xlu0 %1377
    %1379 = vrot.lane.b32.xlu0 %v679, 64
    %v1380 = vpop.permute.xlu0 %1379
    %1381 = vrot.lane.b32.xlu0 %v680, 64
    %v1382 = vpop.permute.xlu0 %1381
    %1383 = vrot.lane.b32.xlu0 %v681, 64
    %v1384 = vpop.permute.xlu0 %1383
    %1385 = vrot.lane.b32.xlu0 %v682, 64
    %v1386 = vpop.permute.xlu0 %1385
    %1387 = vrot.lane.b32.xlu0 %v683, 64
    %v1388 = vpop.permute.xlu0 %1387
    %1389 = vrot.lane.b32.xlu0 %v684, 64
    %v1390 = vpop.permute.xlu0 %1389
    %1423 = vmatprep.subr.mxu0 0.0
    %1424 = vmatpush1.msra.mxu0 %v1328
    %1425 = vmatprep.subr.mxu0 0.0
    %1426 = vmatpush1.msra.mxu0 %v1330
    %1427 = vmatprep.subr.mxu0 0.0
    %1428 = vmatpush1.msra.mxu0 %v1332
    %1429 = vmatprep.subr.mxu0 0.0
    %1430 = vmatpush1.msra.mxu0 %v1334
    %1431 = vmatprep.subr.mxu0 0.0
    %1432 = vmatpush1.msra.mxu0 %v1336
    %1433 = vmatprep.subr.mxu0 0.0
    %1434 = vmatpush1.msra.mxu0 %v1338
    %1435 = vmatprep.subr.mxu0 0.0
    %1436 = vmatpush1.msra.mxu0 %v1340
    %1437 = vmatprep.subr.mxu0 0.0
    %1438 = vmatpush1.msra.mxu0 %v1342
    %1439 = vmatprep.subr.mxu0 0.0
    %1440 = vmatpush1.msra.mxu0 %v1344
    %1441 = vmatprep.subr.mxu0 0.0
    %1442 = vmatpush1.msra.mxu0 %v1346
    %1443 = vmatprep.subr.mxu0 0.0
    %1444 = vmatpush1.msra.mxu0 %v1348
    %1445 = vmatprep.subr.mxu0 0.0
    %1446 = vmatpush1.msra.mxu0 %v1350
    %1447 = vmatprep.subr.mxu0 0.0
    %1448 = vmatpush1.msra.mxu0 %v1352
    %1449 = vmatprep.subr.mxu0 0.0
    %1450 = vmatpush1.msra.mxu0 %v1354
    %1451 = vmatprep.subr.mxu0 0.0
    %1452 = vmatpush1.msra.mxu0 %v1356
    %1453 = vmatprep.subr.mxu0 0.0
    %1454 = vmatpush1.msra.mxu0 %v1358
    %1455 = vmatprep.subr.mxu0 0.0
    %1456 = vmatpush1.msra.mxu0 %v1360
    %1457 = vmatprep.subr.mxu0 0.0
    %1458 = vmatpush1.msra.mxu0 %v1362
    %1459 = vmatprep.subr.mxu0 0.0
    %1460 = vmatpush1.msra.mxu0 %v1364
    %1461 = vmatprep.subr.mxu0 0.0
    %1462 = vmatpush1.msra.mxu0 %v1366
    %1463 = vmatprep.subr.mxu0 0.0
    %1464 = vmatpush1.msra.mxu0 %v1368
    %1465 = vmatprep.subr.mxu0 0.0
    %1466 = vmatpush1.msra.mxu0 %v1370
    %1467 = vmatprep.subr.mxu0 0.0
    %1468 = vmatpush1.msra.mxu0 %v1372
    %1469 = vmatprep.subr.mxu0 0.0
    %1470 = vmatpush1.msra.mxu0 %v1374
    %1471 = vmatprep.subr.mxu0 0.0
    %1472 = vmatpush1.msra.mxu0 %v1376
    %1473 = vmatprep.subr.mxu0 0.0
    %1474 = vmatpush1.msra.mxu0 %v1378
    %1475 = vmatprep.subr.mxu0 0.0
    %1476 = vmatpush1.msra.mxu0 %v1380
    %1477 = vmatprep.subr.mxu0 0.0
    %1478 = vmatpush1.msra.mxu0 %v1382
    %1479 = vmatprep.subr.mxu0 0.0
    %1480 = vmatpush1.msra.mxu0 %v1384
    %1481 = vmatprep.subr.mxu0 0.0
    %1482 = vmatpush1.msra.mxu0 %v1386
    %1483 = vmatprep.subr.mxu0 0.0
    %1484 = vmatpush1.msra.mxu0 %v1388
    %1485 = vmatprep.subr.mxu0 0.0
    %1486 = vmatpush1.msra.mxu0 %v1390
    %1487 = vmatprep.mubr.f32.mxu0 %v1280
    %1488 = vmatmul.mubr.f32.gmra.mrb[0].mxu0 %v1279
    %v1489 = vpop.f32.mrb[0].mxu0
    %v1490 = vadd.f32 0.0, %v1489
    %v1491 = vpop.f32.mrb[0].mxu0
    %1492 = vmatprep.mubr.f32.mxu0 %v1282
    %1493 = vmatmul.mubr.f32.gmra.mrb[0].mxu0 %v1281
    %v1494 = vpop.f32.mrb[0].mxu0
    %v1495 = vadd.f32 0.0, %v1494
    %v1496 = vpop.f32.mrb[0].mxu0
    %1497 = vmatprep.mubr.f32.mxu0 %v1284
    %1498 = vmatmul.mubr.f32.gmra.mrb[0].mxu0 %v1283
    %v1499 = vpop.f32.mrb[0].mxu0
    %v1500 = vadd.f32 0.0, %v1499
    %v1501 = vpop.f32.mrb[0].mxu0
    %1502 = vmatprep.mubr.f32.mxu0 %v1286
    %1503 = vmatmul.mubr.f32.gmra.mrb[0].mxu0 %v1285
    %v1504 = vpop.f32.mrb[0].mxu0
    %v1505 = vadd.f32 0.0, %v1504
    %v1506 = vpop.f32.mrb[0].mxu0
    %1507 = vmatprep.mubr.f32.mxu0 %v1288
    %1508 = vmatmul.mubr.f32.gmra.mrb[0].mxu0 %v1287
    %v1509 = vpop.f32.mrb[0].mxu0
    %v1510 = vadd.f32 0.0, %v1509
    %v1511 = vpop.f32.mrb[0].mxu0
    %1512 = vmatprep.mubr.f32.mxu0 %v1290
    %1513 = vmatmul.mubr.f32.gmra.mrb[0].mxu0 %v1289
    %v1514 = vpop.f32.mrb[0].mxu0
    %v1515 = vadd.f32 0.0, %v1514
    %v1516 = vpop.f32.mrb[0].mxu0
    %1517 = vmatprep.mubr.f32.mxu0 %v1292
    %1518 = vmatmul.mubr.f32.gmra.mrb[0].mxu0 %v1291
    %v1519 = vpop.f32.mrb[0].mxu0
    %v1520 = vadd.f32 0.0, %v1519
    %v1521 = vpop.f32.mrb[0].mxu0
    %1522 = vmatprep.mubr.f32.mxu0 %v1294
    %1523 = vmatmul.mubr.f32.gmra.mrb[0].mxu0 %v1293
    %v1524 = vpop.f32.mrb[0].mxu0
    %v1525 = vadd.f32 0.0, %v1524
    %v1526 = vpop.f32.mrb[0].mxu0
    %1527 = vdwg.mxu0
    %v1528 = vld [vmem:[#allocation9] sm:$0xff]
    %v1529 = vld [vmem:[#allocation9 + $0x8] sm:$0xff]
    %v1530 = vld [vmem:[#allocation9 + $0x10] sm:$0xff]
    %v1531 = vld [vmem:[#allocation9 + $0x18] sm:$0xff]
    %v1532 = vld [vmem:[%s8] sm:$0x1]
    %v1534 = vlaneseq
    %v1535 = vshrl.u32 %v1534, 7
    %v1536 = vsub.s32 0, %v1535
    %v1537 = vrot.slane %v1532, %v1536
    %v1540 = vsel %vm176, %v1490, 0
    %v1543 = vsel %vm176, %v1495, 0
    %v1546 = vsel %vm176, %v1500, 0
    %v1549 = vsel %vm176, %v1505, 0
    %v1552 = vsel %vm176, %v1510, 0
    %v1555 = vsel %vm176, %v1515, 0
    %v1558 = vsel %vm176, %v1520, 0
    %v1561 = vsel %vm176, %v1525, 0
    %1563 = vmatprep.subr.mxu0 0.0
    %1564 = vmatpush1.msra.mxu0 %v1528
    %1565 = vmatprep.subr.mxu0 0.0
    %1566 = vmatpush1.msra.mxu0 %v1529
    %1567 = vmatprep.subr.mxu0 0.0
    %1568 = vmatpush1.msra.mxu0 %v1530
    %1569 = vmatprep.subr.mxu0 0.0
    %1570 = vmatpush1.msra.mxu0 %v1531
    %1571 = vmatprep.subr.mxu0 0.0
    %1572 = vmatpush1.msra.mxu0 0.0
    %1573 = vmatprep.subr.mxu0 0.0
    %1574 = vmatpush1.msra.mxu0 0.0
    %1575 = vmatprep.subr.mxu0 0.0
    %1576 = vmatpush1.msra.mxu0 0.0
    %1577 = vmatprep.subr.mxu0 0.0
    %1578 = vmatpush1.msra.mxu0 0.0
    %1579 = vmatprep.subr.mxu0 0.0
    %1580 = vmatpush1.msra.mxu0 0.0
    %1581 = vmatprep.subr.mxu0 0.0
    %1582 = vmatpush1.msra.mxu0 0.0
    %1583 = vmatprep.subr.mxu0 0.0
    %1584 = vmatpush1.msra.mxu0 0.0
    %1585 = vmatprep.subr.mxu0 0.0
    %1586 = vmatpush1.msra.mxu0 0.0
    %1587 = vmatprep.subr.mxu0 0.0
    %1588 = vmatpush1.msra.mxu0 0.0
    %1589 = vmatprep.subr.mxu0 0.0
    %1590 = vmatpush1.msra.mxu0 0.0
    %1591 = vmatprep.subr.mxu0 0.0
    %1592 = vmatpush1.msra.mxu0 0.0
    %1593 = vmatprep.subr.mxu0 0.0
    %1594 = vmatpush1.msra.mxu0 0.0
    %1595 = vmatprep.subr.mxu0 0.0
    %1596 = vmatpush1.msra.mxu0 0.0
    %1597 = vmatprep.subr.mxu0 0.0
    %1598 = vmatpush1.msra.mxu0 0.0
    %1599 = vmatprep.subr.mxu0 0.0
    %1600 = vmatpush1.msra.mxu0 0.0
    %1601 = vmatprep.subr.mxu0 0.0
    %1602 = vmatpush1.msra.mxu0 0.0
    %1603 = vmatprep.subr.mxu0 0.0
    %1604 = vmatpush1.msra.mxu0 0.0
    %1605 = vmatprep.subr.mxu0 0.0
    %1606 = vmatpush1.msra.mxu0 0.0
    %1607 = vmatprep.subr.mxu0 0.0
    %1608 = vmatpush1.msra.mxu0 0.0
    %1609 = vmatprep.subr.mxu0 0.0
    %1610 = vmatpush1.msra.mxu0 0.0
    %1611 = vmatprep.subr.mxu0 0.0
    %1612 = vmatpush1.msra.mxu0 0.0
    %1613 = vmatprep.subr.mxu0 0.0
    %1614 = vmatpush1.msra.mxu0 0.0
    %1615 = vmatprep.subr.mxu0 0.0
    %1616 = vmatpush1.msra.mxu0 0.0
    %1617 = vmatprep.subr.mxu0 0.0
    %1618 = vmatpush1.msra.mxu0 0.0
    %1619 = vmatprep.subr.mxu0 0.0
    %1620 = vmatpush1.msra.mxu0 0.0
    %1621 = vmatprep.subr.mxu0 0.0
    %1622 = vmatpush1.msra.mxu0 0.0
    %1623 = vmatprep.subr.mxu0 0.0
    %1624 = vmatpush1.msra.mxu0 0.0
    %1625 = vmatprep.subr.mxu0 0.0
    %1626 = vmatpush1.msra.mxu0 0.0
    %1627 = vmatprep.mubr.f32.mxu0 0.0
    %1628 = vmatmul.mubr.f32.gmra.mrb[0].mxu0 %v1540
    %v1629 = vpop.f32.mrb[0].mxu0
    %v1630 = vadd.f32 %v1537, %v1629
    %v1631 = vpop.f32.mrb[0].mxu0
    %1632 = vmatprep.mubr.f32.mxu0 0.0
    %1633 = vmatmul.mubr.f32.gmra.mrb[0].mxu0 %v1543
    %v1634 = vpop.f32.mrb[0].mxu0
    %v1635 = vadd.f32 %v1537, %v1634
    %v1636 = vpop.f32.mrb[0].mxu0
    %1637 = vmatprep.mubr.f32.mxu0 0.0
    %1638 = vmatmul.mubr.f32.gmra.mrb[0].mxu0 %v1546
    %v1639 = vpop.f32.mrb[0].mxu0
    %v1640 = vadd.f32 %v1537, %v1639
    %v1641 = vpop.f32.mrb[0].mxu0
    %1642 = vmatprep.mubr.f32.mxu0 0.0
    %1643 = vmatmul.mubr.f32.gmra.mrb[0].mxu0 %v1549
    %v1644 = vpop.f32.mrb[0].mxu0
    %v1645 = vadd.f32 %v1537, %v1644
    %v1646 = vpop.f32.mrb[0].mxu0
    %1647 = vmatprep.mubr.f32.mxu0 0.0
    %1648 = vmatmul.mubr.f32.gmra.mrb[0].mxu0 %v1552
    %v1649 = vpop.f32.mrb[0].mxu0
    %v1650 = vadd.f32 %v1537, %v1649
    %v1651 = vpop.f32.mrb[0].mxu0
    %1652 = vmatprep.mubr.f32.mxu0 0.0
    %1653 = vmatmul.mubr.f32.gmra.mrb[0].mxu0 %v1555
    %v1654 = vpop.f32.mrb[0].mxu0
    %v1655 = vadd.f32 %v1537, %v1654
    %v1656 = vpop.f32.mrb[0].mxu0
    %1657 = vmatprep.mubr.f32.mxu0 0.0
    %1658 = vmatmul.mubr.f32.gmra.mrb[0].mxu0 %v1558
    %v1659 = vpop.f32.mrb[0].mxu0
    %v1660 = vadd.f32 %v1537, %v1659
    %v1661 = vpop.f32.mrb[0].mxu0
    %1662 = vmatprep.mubr.f32.mxu0 0.0
    %1663 = vmatmul.mubr.f32.gmra.mrb[0].mxu0 %v1561
    %v1664 = vpop.f32.mrb[0].mxu0
    %v1665 = vadd.f32 %v1537, %v1664
    %v1666 = vpop.f32.mrb[0].mxu0
    %1667 = vdwg.mxu0
    %v1668 = vld [vmem:[%s9] sm:$0x1]
    %v1670 = vlaneseq
    %v1671 = vshrl.u32 %v1670, 7
    %v1672 = vsub.s32 0, %v1671
    %v1673 = vrot.slane %v1668, %v1672
    %v1675 = vmul.f32 %v1630, %v1673
    %v1676 = vmul.f32 %v1635, %v1673
    %v1677 = vmul.f32 %v1640, %v1673
    %v1678 = vmul.f32 %v1645, %v1673
    %v1679 = vmul.f32 %v1650, %v1673
    %v1680 = vmul.f32 %v1655, %v1673
    %v1681 = vmul.f32 %v1660, %v1673
    %v1682 = vmul.f32 %v1665, %v1673
    %v1683 = vsel %vm176, %v1675, 0.0
    %1684 = vadd.xlane.f32.xlu0 %v1683
    %v1685 = vpop.xlane.xlu0 %1684
    %v1686 = vsel %vm176, %v1676, 0.0
    %1687 = vadd.xlane.f32.xlu0 %v1686
    %v1688 = vpop.xlane.xlu0 %1687
    %v1689 = vsel %vm176, %v1677, 0.0
    %1690 = vadd.xlane.f32.xlu0 %v1689
    %v1691 = vpop.xlane.xlu0 %1690
    %v1692 = vsel %vm176, %v1678, 0.0
    %1693 = vadd.xlane.f32.xlu0 %v1692
    %v1694 = vpop.xlane.xlu0 %1693
    %v1695 = vsel %vm176, %v1679, 0.0
    %1696 = vadd.xlane.f32.xlu0 %v1695
    %v1697 = vpop.xlane.xlu0 %1696
    %v1698 = vsel %vm176, %v1680, 0.0
    %1699 = vadd.xlane.f32.xlu0 %v1698
    %v1700 = vpop.xlane.xlu0 %1699
    %v1701 = vsel %vm176, %v1681, 0.0
    %1702 = vadd.xlane.f32.xlu0 %v1701
    %v1703 = vpop.xlane.xlu0 %1702
    %v1704 = vsel %vm176, %v1682, 0.0
    %1705 = vadd.xlane.f32.xlu0 %v1704
    %v1706 = vpop.xlane.xlu0 %1705
    %v1707 = vld [vmem:[#allocation2] sm:$0x1]
    %v1709 = vlaneseq
    %v1710 = vshrl.u32 %v1709, 7
    %v1711 = vsub.s32 0, %v1710
    %v1712 = vrot.slane %v1707, %v1711
    %v1714 = vadd.f32 %v1685, %v1712
    %v1715 = vadd.f32 %v1688, %v1712
    %v1716 = vadd.f32 %v1691, %v1712
    %v1717 = vadd.f32 %v1694, %v1712
    %v1718 = vadd.f32 %v1697, %v1712
    %v1719 = vadd.f32 %v1700, %v1712
    %v1720 = vadd.f32 %v1703, %v1712
    %v1721 = vadd.f32 %v1706, %v1712
    %vm1722 = vcmask 7168
    %v1723 = vsel %vm1722, %v1714, -inf
    %v1724 = vrot.slane %v1723, 4
    %v1725 = vmax.f32 %v1723, %v1724
    %v1726 = vrot.slane %v1725, 2
    %v1727 = vmax.f32 %v1725, %v1726
    %v1728 = vrot.slane %v1727, 1
    %v1729 = vmax.f32 %v1727, %v1728
    %v1730 = vsel %vm1722, %v1715, -inf
    %v1731 = vrot.slane %v1730, 4
    %v1732 = vmax.f32 %v1730, %v1731
    %v1733 = vrot.slane %v1732, 2
    %v1734 = vmax.f32 %v1732, %v1733
    %v1735 = vrot.slane %v1734, 1
    %v1736 = vmax.f32 %v1734, %v1735
    %v1737 = vsel %vm1722, %v1716, -inf
    %v1738 = vrot.slane %v1737, 4
    %v1739 = vmax.f32 %v1737, %v1738
    %v1740 = vrot.slane %v1739, 2
    %v1741 = vmax.f32 %v1739, %v1740
    %v1742 = vrot.slane %v1741, 1
    %v1743 = vmax.f32 %v1741, %v1742
    %v1744 = vsel %vm1722, %v1717, -inf
    %v1745 = vrot.slane %v1744, 4
    %v1746 = vmax.f32 %v1744, %v1745
    %v1747 = vrot.slane %v1746, 2
    %v1748 = vmax.f32 %v1746, %v1747
    %v1749 = vrot.slane %v1748, 1
    %v1750 = vmax.f32 %v1748, %v1749
    %v1751 = vsel %vm1722, %v1718, -inf
    %v1752 = vrot.slane %v1751, 4
    %v1753 = vmax.f32 %v1751, %v1752
    %v1754 = vrot.slane %v1753, 2
    %v1755 = vmax.f32 %v1753, %v1754
    %v1756 = vrot.slane %v1755, 1
    %v1757 = vmax.f32 %v1755, %v1756
    %v1758 = vsel %vm1722, %v1719, -inf
    %v1759 = vrot.slane %v1758, 4
    %v1760 = vmax.f32 %v1758, %v1759
    %v1761 = vrot.slane %v1760, 2
    %v1762 = vmax.f32 %v1760, %v1761
    %v1763 = vrot.slane %v1762, 1
    %v1764 = vmax.f32 %v1762, %v1763
    %v1765 = vsel %vm1722, %v1720, -inf
    %v1766 = vrot.slane %v1765, 4
    %v1767 = vmax.f32 %v1765, %v1766
    %v1768 = vrot.slane %v1767, 2
    %v1769 = vmax.f32 %v1767, %v1768
    %v1770 = vrot.slane %v1769, 1
    %v1771 = vmax.f32 %v1769, %v1770
    %v1772 = vsel %vm1722, %v1721, -inf
    %v1773 = vrot.slane %v1772, 4
    %v1774 = vmax.f32 %v1772, %v1773
    %v1775 = vrot.slane %v1774, 2
    %v1776 = vmax.f32 %v1774, %v1775
    %v1777 = vrot.slane %v1776, 1
    %v1778 = vmax.f32 %v1776, %v1777
    %v1779 = vsub.f32 %v1714, %v1729
    %v1780 = vsub.f32 %v1715, %v1736
    %v1781 = vsub.f32 %v1716, %v1743
    %v1782 = vsub.f32 %v1717, %v1750
    %v1783 = vsub.f32 %v1718, %v1757
    %v1784 = vsub.f32 %v1719, %v1764
    %v1785 = vsub.f32 %v1720, %v1771
    %v1786 = vsub.f32 %v1721, %v1778
    %v1787 = vmul.f32 %v1779, 1.442695
    %v1788 = vpow.pop %v1787
    %v1789 = vmul.f32 %v1780, 1.442695
    %v1790 = vpow.pop %v1789
    %v1791 = vmul.f32 %v1781, 1.442695
    %v1792 = vpow.pop %v1791
    %v1793 = vmul.f32 %v1782, 1.442695
    %v1794 = vpow.pop %v1793
    %v1795 = vmul.f32 %v1783, 1.442695
    %v1796 = vpow.pop %v1795
    %v1797 = vmul.f32 %v1784, 1.442695
    %v1798 = vpow.pop %v1797
    %v1799 = vmul.f32 %v1785, 1.442695
    %v1800 = vpow.pop %v1799
    %v1801 = vmul.f32 %v1786, 1.442695
    %v1802 = vpow.pop %v1801
    %1804 = vset.pattern.permute.xlu0 0
    %1805 = vperm.xlu0 %1804, %v1788
    %v1806 = vpop.permute.xlu0 %1805
    %1809 = vset.pattern.permute.xlu0 0
    %1810 = vperm.xlu0 %1809, %v1790
    %v1811 = vpop.permute.xlu0 %1810
    %1814 = vset.pattern.permute.xlu0 0
    %1815 = vperm.xlu0 %1814, %v1792
    %v1816 = vpop.permute.xlu0 %1815
    %1819 = vset.pattern.permute.xlu0 0
    %1820 = vperm.xlu0 %1819, %v1794
    %v1821 = vpop.permute.xlu0 %1820
    %1824 = vset.pattern.permute.xlu0 0
    %1825 = vperm.xlu0 %1824, %v1796
    %v1826 = vpop.permute.xlu0 %1825
    %1829 = vset.pattern.permute.xlu0 0
    %1830 = vperm.xlu0 %1829, %v1798
    %v1831 = vpop.permute.xlu0 %1830
    %1834 = vset.pattern.permute.xlu0 0
    %1835 = vperm.xlu0 %1834, %v1800
    %v1836 = vpop.permute.xlu0 %1835
    %1839 = vset.pattern.permute.xlu0 0
    %1840 = vperm.xlu0 %1839, %v1802
    %v1841 = vpop.permute.xlu0 %1840
    %v1843 = vmul.f32 %v1630, %v1806
    %v1844 = vmul.f32 %v1635, %v1811
    %v1845 = vmul.f32 %v1640, %v1816
    %v1846 = vmul.f32 %v1645, %v1821
    %v1847 = vmul.f32 %v1650, %v1826
    %v1848 = vmul.f32 %v1655, %v1831
    %v1849 = vmul.f32 %v1660, %v1836
    %v1850 = vmul.f32 %v1665, %v1841
    %v1851 = vsel %vm176, %v1843, 0.0
    %v1852 = vrot.slane %v1851, 4
    %v1853 = vadd.f32 %v1851, %v1852
    %v1854 = vrot.slane %v1853, 2
    %v1855 = vadd.f32 %v1853, %v1854
    %v1856 = vrot.slane %v1855, 1
    %v1857 = vadd.f32 %v1855, %v1856
    %v1858 = vsel %vm176, %v1844, 0.0
    %v1859 = vrot.slane %v1858, 4
    %v1860 = vadd.f32 %v1858, %v1859
    %v1861 = vrot.slane %v1860, 2
    %v1862 = vadd.f32 %v1860, %v1861
    %v1863 = vrot.slane %v1862, 1
    %v1864 = vadd.f32 %v1862, %v1863
    %v1865 = vsel %vm176, %v1845, 0.0
    %v1866 = vrot.slane %v1865, 4
    %v1867 = vadd.f32 %v1865, %v1866
    %v1868 = vrot.slane %v1867, 2
    %v1869 = vadd.f32 %v1867, %v1868
    %v1870 = vrot.slane %v1869, 1
    %v1871 = vadd.f32 %v1869, %v1870
    %v1872 = vsel %vm176, %v1846, 0.0
    %v1873 = vrot.slane %v1872, 4
    %v1874 = vadd.f32 %v1872, %v1873
    %v1875 = vrot.slane %v1874, 2
    %v1876 = vadd.f32 %v1874, %v1875
    %v1877 = vrot.slane %v1876, 1
    %v1878 = vadd.f32 %v1876, %v1877
    %v1879 = vsel %vm176, %v1847, 0.0
    %v1880 = vrot.slane %v1879, 4
    %v1881 = vadd.f32 %v1879, %v1880
    %v1882 = vrot.slane %v1881, 2
    %v1883 = vadd.f32 %v1881, %v1882
    %v1884 = vrot.slane %v1883, 1
    %v1885 = vadd.f32 %v1883, %v1884
    %v1886 = vsel %vm176, %v1848, 0.0
    %v1887 = vrot.slane %v1886, 4
    %v1888 = vadd.f32 %v1886, %v1887
    %v1889 = vrot.slane %v1888, 2
    %v1890 = vadd.f32 %v1888, %v1889
    %v1891 = vrot.slane %v1890, 1
    %v1892 = vadd.f32 %v1890, %v1891
    %v1893 = vsel %vm176, %v1849, 0.0
    %v1894 = vrot.slane %v1893, 4
    %v1895 = vadd.f32 %v1893, %v1894
    %v1896 = vrot.slane %v1895, 2
    %v1897 = vadd.f32 %v1895, %v1896
    %v1898 = vrot.slane %v1897, 1
    %v1899 = vadd.f32 %v1897, %v1898
    %v1900 = vsel %vm176, %v1850, 0.0
    %v1901 = vrot.slane %v1900, 4
    %v1902 = vadd.f32 %v1900, %v1901
    %v1903 = vrot.slane %v1902, 2
    %v1904 = vadd.f32 %v1902, %v1903
    %v1905 = vrot.slane %v1904, 1
    %v1906 = vadd.f32 %v1904, %v1905
    %v1907 = vsel %vm1722, %v1788, 0.0
    %v1908 = vrot.slane %v1907, 4
    %v1909 = vadd.f32 %v1907, %v1908
    %v1910 = vrot.slane %v1909, 2
    %v1911 = vadd.f32 %v1909, %v1910
    %v1912 = vrot.slane %v1911, 1
    %v1913 = vadd.f32 %v1911, %v1912
    %v1914 = vsel %vm1722, %v1790, 0.0
    %v1915 = vrot.slane %v1914, 4
    %v1916 = vadd.f32 %v1914, %v1915
    %v1917 = vrot.slane %v1916, 2
    %v1918 = vadd.f32 %v1916, %v1917
    %v1919 = vrot.slane %v1918, 1
    %v1920 = vadd.f32 %v1918, %v1919
    %v1921 = vsel %vm1722, %v1792, 0.0
    %v1922 = vrot.slane %v1921, 4
    %v1923 = vadd.f32 %v1921, %v1922
    %v1924 = vrot.slane %v1923, 2
    %v1925 = vadd.f32 %v1923, %v1924
    %v1926 = vrot.slane %v1925, 1
    %v1927 = vadd.f32 %v1925, %v1926
    %v1928 = vsel %vm1722, %v1794, 0.0
    %v1929 = vrot.slane %v1928, 4
    %v1930 = vadd.f32 %v1928, %v1929
    %v1931 = vrot.slane %v1930, 2
    %v1932 = vadd.f32 %v1930, %v1931
    %v1933 = vrot.slane %v1932, 1
    %v1934 = vadd.f32 %v1932, %v1933
    %v1935 = vsel %vm1722, %v1796, 0.0
    %v1936 = vrot.slane %v1935, 4
    %v1937 = vadd.f32 %v1935, %v1936
    %v1938 = vrot.slane %v1937, 2
    %v1939 = vadd.f32 %v1937, %v1938
    %v1940 = vrot.slane %v1939, 1
    %v1941 = vadd.f32 %v1939, %v1940
    %v1942 = vsel %vm1722, %v1798, 0.0
    %v1943 = vrot.slane %v1942, 4
    %v1944 = vadd.f32 %v1942, %v1943
    %v1945 = vrot.slane %v1944, 2
    %v1946 = vadd.f32 %v1944, %v1945
    %v1947 = vrot.slane %v1946, 1
    %v1948 = vadd.f32 %v1946, %v1947
    %v1949 = vsel %vm1722, %v1800, 0.0
    %v1950 = vrot.slane %v1949, 4
    %v1951 = vadd.f32 %v1949, %v1950
    %v1952 = vrot.slane %v1951, 2
    %v1953 = vadd.f32 %v1951, %v1952
    %v1954 = vrot.slane %v1953, 1
    %v1955 = vadd.f32 %v1953, %v1954
    %v1956 = vsel %vm1722, %v1802, 0.0
    %v1957 = vrot.slane %v1956, 4
    %v1958 = vadd.f32 %v1956, %v1957
    %v1959 = vrot.slane %v1958, 2
    %v1960 = vadd.f32 %v1958, %v1959
    %v1961 = vrot.slane %v1960, 1
    %v1962 = vadd.f32 %v1960, %v1961
    %v1963 = vrcp.pop %v1913
    %v1964 = vmul.f32 1.0, %v1963
    %v1965 = vrcp.pop %v1920
    %v1966 = vmul.f32 1.0, %v1965
    %v1967 = vrcp.pop %v1927
    %v1968 = vmul.f32 1.0, %v1967
    %v1969 = vrcp.pop %v1934
    %v1970 = vmul.f32 1.0, %v1969
    %v1971 = vrcp.pop %v1941
    %v1972 = vmul.f32 1.0, %v1971
    %v1973 = vrcp.pop %v1948
    %v1974 = vmul.f32 1.0, %v1973
    %v1975 = vrcp.pop %v1955
    %v1976 = vmul.f32 1.0, %v1975
    %v1977 = vrcp.pop %v1962
    %v1978 = vmul.f32 1.0, %v1977
    %1980 = vset.pattern.permute.xlu0 0
    %1981 = vperm.xlu0 %1980, %v1964
    %v1982 = vpop.permute.xlu0 %1981
    %1985 = vset.pattern.permute.xlu0 0
    %1986 = vperm.xlu0 %1985, %v1966
    %v1987 = vpop.permute.xlu0 %1986
    %1990 = vset.pattern.permute.xlu0 0
    %1991 = vperm.xlu0 %1990, %v1968
    %v1992 = vpop.permute.xlu0 %1991
    %1995 = vset.pattern.permute.xlu0 0
    %1996 = vperm.xlu0 %1995, %v1970
    %v1997 = vpop.permute.xlu0 %1996
    %2000 = vset.pattern.permute.xlu0 0
    %2001 = vperm.xlu0 %2000, %v1972
    %v2002 = vpop.permute.xlu0 %2001
    %2005 = vset.pattern.permute.xlu0 0
    %2006 = vperm.xlu0 %2005, %v1974
    %v2007 = vpop.permute.xlu0 %2006
    %2010 = vset.pattern.permute.xlu0 0
    %2011 = vperm.xlu0 %2010, %v1976
    %v2012 = vpop.permute.xlu0 %2011
    %2015 = vset.pattern.permute.xlu0 0
    %2016 = vperm.xlu0 %2015, %v1978
    %v2017 = vpop.permute.xlu0 %2016
    %v2019 = vmul.f32 %v1857, %v1982
    %v2020 = vmul.f32 %v1864, %v1987
    %v2021 = vmul.f32 %v1871, %v1992
    %v2022 = vmul.f32 %v1878, %v1997
    %v2023 = vmul.f32 %v1885, %v2002
    %v2024 = vmul.f32 %v1892, %v2007
    %v2025 = vmul.f32 %v1899, %v2012
    %v2026 = vmul.f32 %v1906, %v2017
    %v2027 = vld [vmem:[%s11] sm:$0xff]
    %v2028 = vld [vmem:[%s11 + $0x8] sm:$0xff]
    %v2029 = vld [vmem:[%s11 + $0x10] sm:$0xff]
    %v2030 = vld [vmem:[%s11 + $0x18] sm:$0xff]
    %v2031 = vld [vmem:[%s12] sm:$0x1]
    %v2033 = vlaneseq
    %v2034 = vshrl.u32 %v2033, 7
    %v2035 = vsub.s32 0, %v2034
    %v2036 = vrot.slane %v2031, %v2035
    %vm2046 = vcmask 1041409
    %v2047 = vsel %vm2046, %v2020, %v2019
    %vm2048 = vcmask 1042434
    %v2049 = vsel %vm2048, %v2021, %v2047
    %vm2050 = vcmask 1043459
    %v2051 = vsel %vm2050, %v2022, %v2049
    %vm2052 = vcmask 1044484
    %v2053 = vsel %vm2052, %v2023, %v2051
    %vm2054 = vcmask 1045509
    %v2055 = vsel %vm2054, %v2024, %v2053
    %vm2056 = vcmask 1046534
    %v2057 = vsel %vm2056, %v2025, %v2055
    %vm2058 = vcmask 1047559
    %v2059 = vsel %vm2058, %v2026, %v2057
    %v2060 = vsel %vm176, %v2059, 0
    %2062 = vmatprep.subr.mxu0 0.0
    %2063 = vmatpush1.msra.mxu0 %v2027
    %2064 = vmatprep.subr.mxu0 0.0
    %2065 = vmatpush1.msra.mxu0 %v2028
    %2066 = vmatprep.subr.mxu0 0.0
    %2067 = vmatpush1.msra.mxu0 %v2029
    %2068 = vmatprep.subr.mxu0 0.0
    %2069 = vmatpush1.msra.mxu0 %v2030
    %2070 = vmatprep.subr.mxu0 0.0
    %2071 = vmatpush1.msra.mxu0 0.0
    %2072 = vmatprep.subr.mxu0 0.0
    %2073 = vmatpush1.msra.mxu0 0.0
    %2074 = vmatprep.subr.mxu0 0.0
    %2075 = vmatpush1.msra.mxu0 0.0
    %2076 = vmatprep.subr.mxu0 0.0
    %2077 = vmatpush1.msra.mxu0 0.0
    %2078 = vmatprep.subr.mxu0 0.0
    %2079 = vmatpush1.msra.mxu0 0.0
    %2080 = vmatprep.subr.mxu0 0.0
    %2081 = vmatpush1.msra.mxu0 0.0
    %2082 = vmatprep.subr.mxu0 0.0
    %2083 = vmatpush1.msra.mxu0 0.0
    %2084 = vmatprep.subr.mxu0 0.0
    %2085 = vmatpush1.msra.mxu0 0.0
    %2086 = vmatprep.subr.mxu0 0.0
    %2087 = vmatpush1.msra.mxu0 0.0
    %2088 = vmatprep.subr.mxu0 0.0
    %2089 = vmatpush1.msra.mxu0 0.0
    %2090 = vmatprep.subr.mxu0 0.0
    %2091 = vmatpush1.msra.mxu0 0.0
    %2092 = vmatprep.subr.mxu0 0.0
    %2093 = vmatpush1.msra.mxu0 0.0
    %2094 = vmatprep.subr.mxu0 0.0
    %2095 = vmatpush1.msra.mxu0 0.0
    %2096 = vmatprep.subr.mxu0 0.0
    %2097 = vmatpush1.msra.mxu0 0.0
    %2098 = vmatprep.subr.mxu0 0.0
    %2099 = vmatpush1.msra.mxu0 0.0
    %2100 = vmatprep.subr.mxu0 0.0
    %2101 = vmatpush1.msra.mxu0 0.0
    %2102 = vmatprep.subr.mxu0 0.0
    %2103 = vmatpush1.msra.mxu0 0.0
    %2104 = vmatprep.subr.mxu0 0.0
    %2105 = vmatpush1.msra.mxu0 0.0
    %2106 = vmatprep.subr.mxu0 0.0
    %2107 = vmatpush1.msra.mxu0 0.0
    %2108 = vmatprep.subr.mxu0 0.0
    %2109 = vmatpush1.msra.mxu0 0.0
    %2110 = vmatprep.subr.mxu0 0.0
    %2111 = vmatpush1.msra.mxu0 0.0
    %2112 = vmatprep.subr.mxu0 0.0
    %2113 = vmatpush1.msra.mxu0 0.0
    %2114 = vmatprep.subr.mxu0 0.0
    %2115 = vmatpush1.msra.mxu0 0.0
    %2116 = vmatprep.subr.mxu0 0.0
    %2117 = vmatpush1.msra.mxu0 0.0
    %2118 = vmatprep.subr.mxu0 0.0
    %2119 = vmatpush1.msra.mxu0 0.0
    %2120 = vmatprep.subr.mxu0 0.0
    %2121 = vmatpush1.msra.mxu0 0.0
    %2122 = vmatprep.subr.mxu0 0.0
    %2123 = vmatpush1.msra.mxu0 0.0
    %2124 = vmatprep.subr.mxu0 0.0
    %2125 = vmatpush1.msra.mxu0 0.0
    %2126 = vmatprep.mubr.f32.mxu0 0.0
    %2127 = vmatmul.mubr.f32.gmra.mrb[0].mxu0 %v2060
    %v2128 = vpop.f32.mrb[0].mxu0
    %v2129 = vadd.f32 %v2036, %v2128
    %v2130 = vpop.f32.mrb[0].mxu0
    %2131 = vdwg.mxu0
    %v2132 = vld [vmem:[%s13] sm:$0x1]
    %v2133 = vld [vmem:[%s14] sm:$0x1]
    %vm2134 = vcmask 523264
    %v2135 = vsel %vm2134, %v2129, 0.0
    %2136 = vadd.xlane.f32.xlu0 %v2135
    %v2137 = vpop.xlane.xlu0 %2136
    %v2138 = vrcp.pop 64.0
    %v2139 = vmul.f32 %v2137, %v2138
    %v2140 = vsub.f32 %v2129, %v2139
    %v2141 = vmul.f32 %v2140, %v2140
    %v2142 = vsel %vm2134, %v2141, 0.0
    %2143 = vadd.xlane.f32.xlu0 %v2142
    %v2144 = vpop.xlane.xlu0 %2143
    %v2145 = vmul.f32 %v2144, %v2138
    %v2146 = vadd.f32 %v2145, 1e-05
    %v2147 = vrsqrt.pop %v2146
    %v2148 = vmul.f32 %v2140, %v2147
    %v2150 = vlaneseq
    %v2151 = vshrl.u32 %v2150, 7
    %v2152 = vsub.s32 0, %v2151
    %v2153 = vrot.slane %v2132, %v2152
    %v2155 = vmul.f32 %v2148, %v2153
    %v2157 = vlaneseq
    %v2158 = vshrl.u32 %v2157, 7
    %v2159 = vsub.s32 0, %v2158
    %v2160 = vrot.slane %v2133, %v2159
    %v2162 = vadd.f32 %v2155, %v2160
    %2163 = vst.msk [vmem:[#allocation15] sm:$0xff] %vm2134, %v2162
    // Predicated region
    $region102: #{tpu_custom_call.1} parent=1 // pred_check
      _
    $region103: #{tpu_custom_call.1} parent=1 // pred_check_branch
      %2165 = sbr.rel (0) target = $region105
    $region104: #{tpu_custom_call.1} parent=1 // pred_region
      %s2167 = ssub.s32 128, 128
      %2168 = vsyncadd [#allocation5], %s2167
      %s2170 = sshll.u32 [#allocation15], 4
      %s2171 = int_to_ptr.vmem [resolvable:$true] %s2170
      %2173 = dma.vmem_to_hbm [thread:$0]  %s2171, 128, %s18, [#allocation5]
    $region105: #{tpu_custom_call.1} parent=1 // pred_fallthru
      _
    // Predicated region
    $region106: #{tpu_custom_call.1} parent=1 // pred_check
      _
    $region107: #{tpu_custom_call.1} parent=1 // pred_check_branch
      %2175 = sbr.rel (0) target = $region109
    $region108: #{tpu_custom_call.1} parent=1 // pred_region
      %2176 = dma.done [#allocation5], 128
    $region109: #{tpu_custom_call.1} parent=1 // pred_fallthru
      _
    %2177 = vsyncpa [#allocation4], 1
    %2178 = vsyncpa [#allocation7], 1
    %2179 = vsyncpa [#allocation10], 1
    %2180 = vsyncpa [#allocation13], 1
    %2181 = vsyncpa [#allocation5], 1

</llo_original>
